<compile_context>
chip_gen: v6e
topology: v6e:2x2x1
jax: 0.10.0
libtpu: 0.0.40
codegen_flags: <defaults>
</compile_context>

<pallas_src>
import jax
import jax.numpy as jnp
from jax.experimental import pallas as pl
from jax.experimental.pallas import tpu as pltpu


def _round_up(v, m):
    return ((v + m - 1) // m) * m


def cognition_kernel(x_ref, mem_ref,
                     wam_ref, bam_ref,      # fused attention_dense || memory_dense (f32)
                     w1_ref, b1_ref,        # fc1 (bf16 weights, f32 bias)
                     w2_ref, b2_ref,        # fc2 (lane-padded to 128, bf16 / f32)
                     wo_ref, bo_ref,        # output_layer (rows padded to 128, bf16 / f32)
                     out_ref, upd_ref):
    memory_dim = mem_ref.shape[1]
    mxu_dtype = w1_ref.dtype

    x = x_ref[...]                            # f32
    mem = mem_ref[...]                        # f32

    # Single fused projection in f32: [TB, 2*memory_dim].
    proj = jnp.dot(x, wam_ref[...], preferred_element_type=jnp.float32) + bam_ref[...]
    att_logits = proj[:, :memory_dim]
    mem_proj = proj[:, memory_dim:]

    # softmax(attention_dense(x)), f32, exact normalization.
    att_max = jnp.max(att_logits, axis=-1, keepdims=True)
    att_exp = jnp.exp(att_logits - att_max)
    att = att_exp / jnp.sum(att_exp, axis=-1, keepdims=True)

    # updated_memory = memory_state + attention_weights * memory_dense(x)
    upd = mem + att * mem_proj

    # fc1 -> relu -> fc2 -> relu -> output_layer (bf16 MXU operands, f32 acc).
    h1 = jnp.maximum(
        jnp.dot(upd.astype(mxu_dtype), w1_ref[...], preferred_element_type=jnp.float32)
        + b1_ref[...], 0.0)
    h2 = jnp.maximum(
        jnp.dot(h1.astype(mxu_dtype), w2_ref[...], preferred_element_type=jnp.float32)
        + b2_ref[...], 0.0)
    out = (jnp.dot(h2.astype(mxu_dtype), wo_ref[...], preferred_element_type=jnp.float32)
           + bo_ref[...])

    out_ref[...] = out.astype(out_ref.dtype)
    upd_ref[...] = upd.astype(upd_ref.dtype)


def pack_params(params, mxu_dtype=jnp.bfloat16):
    """One-time parameter packing (call at parameter-load time, NOT per forward).

    Fuses attention/memory projections into one [in, 2*mem] f32 matrix and
    zero-pads fc2's 64-wide output to 128 lanes so the h2 intermediate stays
    full lane width. Padded lanes are exactly zero, so results are unchanged.
    """
    wa, ba, wm, bm, w1, b1, w2, b2, wo, bo = params

    wam = jnp.concatenate([wa, wm], axis=1).astype(jnp.float32)     # [in, 2*mem]
    bam = jnp.concatenate([ba, bm], axis=1).astype(jnp.float32)     # [1, 2*mem]

    h2 = w2.shape[1]
    h2_pad = _round_up(h2, 128)
    w2_p = jnp.zeros((w2.shape[0], h2_pad), jnp.float32).at[:, :h2].set(w2)
    b2_p = jnp.zeros((1, h2_pad), jnp.float32).at[:, :h2].set(b2)
    wo_p = jnp.zeros((h2_pad, wo.shape[1]), jnp.float32).at[:h2, :].set(wo)

    return (wam, bam,
            w1.astype(mxu_dtype), b1.astype(jnp.float32),
            w2_p.astype(mxu_dtype), b2_p.astype(jnp.float32),
            wo_p.astype(mxu_dtype), bo.astype(jnp.float32))


def cognition_forward(x, memory_state, packed_params, *,
                      block_batch=1024, min_grid_steps=2):
    """Forward pass. `packed_params` must come from pack_params (done once)."""
    B, input_dim = x.shape
    memory_dim = memory_state.shape[1]
    wam, bam, w1, b1, w2, b2, wo, bo = packed_params
    output_dim = wo.shape[1]

    # Big batch tile (HBM-roofline), but keep >= min_grid_steps grid steps so
    # both v7x TensorCores get work under "parallel" semantics. No batch
    # padding: Pallas masks the ragged last block (rows are independent).
    tb_cap = max(8, _round_up(pl.cdiv(B, min_grid_steps), 8))
    TB = min(block_batch, tb_cap)
    grid = (pl.cdiv(B, TB),)

    row_spec = lambda ncols: pl.BlockSpec((TB, ncols), lambda i: (i, 0))
    resident = lambda a: pl.BlockSpec(a.shape, lambda i: (0, 0))   # VMEM-resident

    out, upd = pl.pallas_call(
        cognition_kernel,
        out_shape=(
            jax.ShapeDtypeStruct((B, output_dim), jnp.float32),   # true logits shape
            jax.ShapeDtypeStruct((B, memory_dim), jnp.float32),
        ),
        grid=grid,
        in_specs=[
            row_spec(input_dim), row_spec(memory_dim),
            resident(wam), resident(bam),
            resident(w1), resident(b1),
            resident(w2), resident(b2),
            resident(wo), resident(bo),
        ],
        out_specs=(row_spec(output_dim), row_spec(memory_dim)),
        compiler_params=pltpu.CompilerParams(
            dimension_semantics=("parallel",)),
    )(x, memory_state, wam, bam, w1, b1, w2, b2, wo, bo)

    return out, upd


def init_params(key, input_dim, memory_dim=128, output_dim=10):
    ks = jax.random.split(key, 10)

    def lin(kw, kb, din, dout):
        # Weight stored [in, out] (transposed vs PyTorch's [out, in]).
        w = jax.random.normal(kw, (din, dout), jnp.float32) * (1.0 / jnp.sqrt(din))
        b = jax.random.normal(kb, (1, dout), jnp.float32) * 0.01
        return w, b

    wa, ba = lin(ks[0], ks[1], input_dim, memory_dim)
    wm, bm = lin(ks[2], ks[3], input_dim, memory_dim)
    w1, b1 = lin(ks[4], ks[5], memory_dim, 128)
    w2, b2 = lin(ks[6], ks[7], 128, 64)
    wo, bo = lin(ks[8], ks[9], 64, output_dim)
    return (wa, ba, wm, bm, w1, b1, w2, b2, wo, bo)


def reference_forward(x, memory_state, params):
    (wa, ba, wm, bm, w1, b1, w2, b2, wo, bo) = params
    att = jax.nn.softmax(x @ wa + ba, axis=-1)
    upd = memory_state + att * (x @ wm + bm)
    h1 = jax.nn.relu(upd @ w1 + b1)
    h2 = jax.nn.relu(h1 @ w2 + b2)
    out = h2 @ wo + bo
    return out, upd


if __name__ == "__main__":
    key = jax.random.PRNGKey(0)
    k_x, k_m, k_p = jax.random.split(key, 3)

    # Small shapes but >1 grid step so the batch pipeline / megacore axis is
    # actually exercised (B=512, TB=256 -> grid=(2,)).
    B, input_dim, memory_dim, output_dim = 512, 32, 128, 10
    x = jax.random.normal(k_x, (B, input_dim), jnp.float32)
    memory_state = jax.random.normal(k_m, (B, memory_dim), jnp.float32)
    params = init_params(k_p, input_dim, memory_dim, output_dim)

    # Pack once, at parameter-load time (outside the per-call jitted forward).
    packed = pack_params(params)

    fwd = jax.jit(cognition_forward)
    out, upd_mem = fwd(x, memory_state, packed)
    jax.block_until_ready((out, upd_mem))

    ref_out, ref_upd = reference_forward(x, memory_state, params)
    assert out.shape == (B, output_dim) and upd_mem.shape == (B, memory_dim)
    # updated_memory is computed fully in f32 -> tight tolerance.
    assert jnp.allclose(upd_mem, ref_upd, atol=1e-4, rtol=1e-4), \
        float(jnp.max(jnp.abs(upd_mem - ref_upd)))
    # logits pass through bf16 MXU operands -> loosened tolerance.
    assert jnp.allclose(out, ref_out, atol=5e-2, rtol=5e-2), \
        float(jnp.max(jnp.abs(out - ref_out)))

    print("KERNEL_OK")
</pallas_src>

<mosaic_0001>
module attributes {stable_mosaic.version = 11 : i64} {
  func.func @cognition_kernel(%arg0: i32, %arg1: memref<256x32xf32, #tpu.memory_space<vmem>>, %arg2: memref<256x128xf32, #tpu.memory_space<vmem>>, %arg3: memref<32x256xf32, #tpu.memory_space<vmem>>, %arg4: memref<1x256xf32, #tpu.memory_space<vmem>>, %arg5: memref<128x128xbf16, #tpu.memory_space<vmem>>, %arg6: memref<1x128xf32, #tpu.memory_space<vmem>>, %arg7: memref<128x128xbf16, #tpu.memory_space<vmem>>, %arg8: memref<1x128xf32, #tpu.memory_space<vmem>>, %arg9: memref<128x10xbf16, #tpu.memory_space<vmem>>, %arg10: memref<1x10xf32, #tpu.memory_space<vmem>>, %arg11: memref<256x10xf32, #tpu.memory_space<vmem>>, %arg12: memref<256x128xf32, #tpu.memory_space<vmem>>) attributes {dimension_semantics = [#tpu.dimension_semantics<parallel>], iteration_bounds = array<i64: 2>, scalar_prefetch = 0 : i64, scratch_operands = 0 : i64, tpu.core_type = #tpu.core_type<tc>, window_params = [{transform_indices = @transform_0, window_bounds = array<i64: 256, 32>}, {transform_indices = @transform_1, window_bounds = array<i64: 256, 128>}, {pipeline_mode = #tpu.pipeline_mode<synchronous>, transform_indices = @transform_2, window_bounds = array<i64: 32, 256>}, {pipeline_mode = #tpu.pipeline_mode<synchronous>, transform_indices = @transform_3, window_bounds = array<i64: 1, 256>}, {pipeline_mode = #tpu.pipeline_mode<synchronous>, transform_indices = @transform_4, window_bounds = array<i64: 128, 128>}, {pipeline_mode = #tpu.pipeline_mode<synchronous>, transform_indices = @transform_5, window_bounds = array<i64: 1, 128>}, {pipeline_mode = #tpu.pipeline_mode<synchronous>, transform_indices = @transform_6, window_bounds = array<i64: 128, 128>}, {pipeline_mode = #tpu.pipeline_mode<synchronous>, transform_indices = @transform_7, window_bounds = array<i64: 1, 128>}, {pipeline_mode = #tpu.pipeline_mode<synchronous>, transform_indices = @transform_8, window_bounds = array<i64: 128, 10>}, {pipeline_mode = #tpu.pipeline_mode<synchronous>, transform_indices = @transform_9, window_bounds = array<i64: 1, 10>}, {transform_indices = @transform_10, window_bounds = array<i64: 256, 10>}, {transform_indices = @transform_11, window_bounds = array<i64: 256, 128>}]} {
    %c0 = arith.constant 0 : index
    %c0_0 = arith.constant 0 : index
    %0 = vector.load %arg1[%c0, %c0_0] : memref<256x32xf32, #tpu.memory_space<vmem>>, vector<256x32xf32>
    %c0_1 = arith.constant 0 : index
    %c0_2 = arith.constant 0 : index
    %1 = vector.load %arg2[%c0_1, %c0_2] : memref<256x128xf32, #tpu.memory_space<vmem>>, vector<256x128xf32>
    %c0_3 = arith.constant 0 : index
    %c0_4 = arith.constant 0 : index
    %2 = vector.load %arg3[%c0_3, %c0_4] : memref<32x256xf32, #tpu.memory_space<vmem>>, vector<32x256xf32>
    %cst = arith.constant dense<0.000000e+00> : vector<256x256xf32>
    %3 = tpu.matmul %0, %2, %cst {dimension_numbers = #tpu.dot_dimension_numbers<[1], [0], [0], [1], [0, 0, 1, 1], [], []>} : vector<256x32xf32>, vector<32x256xf32>, vector<256x256xf32> -> vector<256x256xf32>
    %c0_5 = arith.constant 0 : index
    %c0_6 = arith.constant 0 : index
    %4 = vector.load %arg4[%c0_5, %c0_6] : memref<1x256xf32, #tpu.memory_space<vmem>>, vector<1x256xf32>
    %5 = vector.broadcast %4 : vector<1x256xf32> to vector<256x256xf32>
    %6 = arith.addf %3, %5 : vector<256x256xf32>
    %7 = vector.extract_strided_slice %6 {offsets = [0, 0], sizes = [256, 128], strides = [1, 1]} : vector<256x256xf32> to vector<256x128xf32>
    %8 = vector.extract_strided_slice %6 {offsets = [0, 128], sizes = [256, 128], strides = [1, 1]} : vector<256x256xf32> to vector<256x128xf32>
    %cst_7 = arith.constant dense<0xFF800000> : vector<256xf32>
    %9 = vector.multi_reduction <maximumf>, %7, %cst_7 [1] : vector<256x128xf32> to vector<256xf32>
    %10 = vector.shape_cast %9 : vector<256xf32> to vector<256x1xf32>
    %11 = vector.broadcast %10 : vector<256x1xf32> to vector<256x128xf32>
    %12 = arith.subf %7, %11 : vector<256x128xf32>
    %13 = math.exp %12 : vector<256x128xf32>
    %cst_8 = arith.constant dense<0.000000e+00> : vector<256xf32>
    %14 = vector.multi_reduction <add>, %13, %cst_8 [1] : vector<256x128xf32> to vector<256xf32>
    %15 = vector.shape_cast %14 : vector<256xf32> to vector<256x1xf32>
    %16 = vector.broadcast %15 : vector<256x1xf32> to vector<256x128xf32>
    %17 = arith.divf %13, %16 : vector<256x128xf32>
    %18 = arith.mulf %17, %8 : vector<256x128xf32>
    %19 = arith.addf %1, %18 : vector<256x128xf32>
    %20 = arith.truncf %19 : vector<256x128xf32> to vector<256x128xbf16>
    %c0_9 = arith.constant 0 : index
    %c0_10 = arith.constant 0 : index
    %21 = vector.load %arg5[%c0_9, %c0_10] : memref<128x128xbf16, #tpu.memory_space<vmem>>, vector<128x128xbf16>
    %cst_11 = arith.constant dense<0.000000e+00> : vector<256x128xf32>
    %22 = tpu.matmul %20, %21, %cst_11 {dimension_numbers = #tpu.dot_dimension_numbers<[1], [0], [0], [1], [0, 0, 1, 1], [], []>} : vector<256x128xbf16>, vector<128x128xbf16>, vector<256x128xf32> -> vector<256x128xf32>
    %c0_12 = arith.constant 0 : index
    %c0_13 = arith.constant 0 : index
    %23 = vector.load %arg6[%c0_12, %c0_13] : memref<1x128xf32, #tpu.memory_space<vmem>>, vector<1x128xf32>
    %24 = vector.broadcast %23 : vector<1x128xf32> to vector<256x128xf32>
    %25 = arith.addf %22, %24 : vector<256x128xf32>
    %cst_14 = arith.constant 0.000000e+00 : f32
    %26 = vector.broadcast %cst_14 : f32 to vector<256x128xf32>
    %27 = arith.maximumf %25, %26 : vector<256x128xf32>
    %28 = arith.truncf %27 : vector<256x128xf32> to vector<256x128xbf16>
    %c0_15 = arith.constant 0 : index
    %c0_16 = arith.constant 0 : index
    %29 = vector.load %arg7[%c0_15, %c0_16] : memref<128x128xbf16, #tpu.memory_space<vmem>>, vector<128x128xbf16>
    %cst_17 = arith.constant dense<0.000000e+00> : vector<256x128xf32>
    %30 = tpu.matmul %28, %29, %cst_17 {dimension_numbers = #tpu.dot_dimension_numbers<[1], [0], [0], [1], [0, 0, 1, 1], [], []>} : vector<256x128xbf16>, vector<128x128xbf16>, vector<256x128xf32> -> vector<256x128xf32>
    %c0_18 = arith.constant 0 : index
    %c0_19 = arith.constant 0 : index
    %31 = vector.load %arg8[%c0_18, %c0_19] : memref<1x128xf32, #tpu.memory_space<vmem>>, vector<1x128xf32>
    %32 = vector.broadcast %31 : vector<1x128xf32> to vector<256x128xf32>
    %33 = arith.addf %30, %32 : vector<256x128xf32>
    %cst_20 = arith.constant 0.000000e+00 : f32
    %34 = vector.broadcast %cst_20 : f32 to vector<256x128xf32>
    %35 = arith.maximumf %33, %34 : vector<256x128xf32>
    %36 = arith.truncf %35 : vector<256x128xf32> to vector<256x128xbf16>
    %c0_21 = arith.constant 0 : index
    %c0_22 = arith.constant 0 : index
    %37 = vector.load %arg9[%c0_21, %c0_22] : memref<128x10xbf16, #tpu.memory_space<vmem>>, vector<128x10xbf16>
    %cst_23 = arith.constant dense<0.000000e+00> : vector<256x10xf32>
    %38 = tpu.matmul %36, %37, %cst_23 {dimension_numbers = #tpu.dot_dimension_numbers<[1], [0], [0], [1], [0, 0, 1, 1], [], []>} : vector<256x128xbf16>, vector<128x10xbf16>, vector<256x10xf32> -> vector<256x10xf32>
    %c0_24 = arith.constant 0 : index
    %c0_25 = arith.constant 0 : index
    %39 = vector.load %arg10[%c0_24, %c0_25] : memref<1x10xf32, #tpu.memory_space<vmem>>, vector<1x10xf32>
    %40 = vector.broadcast %39 : vector<1x10xf32> to vector<256x10xf32>
    %41 = arith.addf %38, %40 : vector<256x10xf32>
    %c0_26 = arith.constant 0 : index
    %c0_27 = arith.constant 0 : index
    %42 = vector.load %arg11[%c0_26, %c0_27] : memref<256x10xf32, #tpu.memory_space<vmem>>, vector<256x10xf32>
    tpu.vector_store %arg11[%c0_26, %c0_27], %41 {strides = array<i32>} : memref<256x10xf32, #tpu.memory_space<vmem>>, vector<256x10xf32>,
    %c0_28 = arith.constant 0 : index
    %c0_29 = arith.constant 0 : index
    %43 = vector.load %arg12[%c0_28, %c0_29] : memref<256x128xf32, #tpu.memory_space<vmem>>, vector<256x128xf32>
    tpu.vector_store %arg12[%c0_28, %c0_29], %19 {strides = array<i32>} : memref<256x128xf32, #tpu.memory_space<vmem>>, vector<256x128xf32>,
    return
  }
  func.func @transform_0(%arg0: i32) -> (i32, i32) {
    %c0_i32 = arith.constant 0 : i32
    %c0_i32_0 = arith.constant 0 : i32
    return %arg0, %c0_i32 : i32, i32
  }
  func.func @transform_1(%arg0: i32) -> (i32, i32) {
    %c0_i32 = arith.constant 0 : i32
    %c0_i32_0 = arith.constant 0 : i32
    return %arg0, %c0_i32 : i32, i32
  }
  func.func @transform_2(%arg0: i32) -> (i32, i32) {
    %c0_i32 = arith.constant 0 : i32
    %c0_i32_0 = arith.constant 0 : i32
    %c0_i32_1 = arith.constant 0 : i32
    return %c0_i32, %c0_i32_0 : i32, i32
  }
  func.func @transform_3(%arg0: i32) -> (i32, i32) {
    %c0_i32 = arith.constant 0 : i32
    %c0_i32_0 = arith.constant 0 : i32
    %c0_i32_1 = arith.constant 0 : i32
    return %c0_i32, %c0_i32_0 : i32, i32
  }
  func.func @transform_4(%arg0: i32) -> (i32, i32) {
    %c0_i32 = arith.constant 0 : i32
    %c0_i32_0 = arith.constant 0 : i32
    %c0_i32_1 = arith.constant 0 : i32
    return %c0_i32, %c0_i32_0 : i32, i32
  }
  func.func @transform_5(%arg0: i32) -> (i32, i32) {
    %c0_i32 = arith.constant 0 : i32
    %c0_i32_0 = arith.constant 0 : i32
    %c0_i32_1 = arith.constant 0 : i32
    return %c0_i32, %c0_i32_0 : i32, i32
  }
  func.func @transform_6(%arg0: i32) -> (i32, i32) {
    %c0_i32 = arith.constant 0 : i32
    %c0_i32_0 = arith.constant 0 : i32
    %c0_i32_1 = arith.constant 0 : i32
    return %c0_i32, %c0_i32_0 : i32, i32
  }
  func.func @transform_7(%arg0: i32) -> (i32, i32) {
    %c0_i32 = arith.constant 0 : i32
    %c0_i32_0 = arith.constant 0 : i32
    %c0_i32_1 = arith.constant 0 : i32
    return %c0_i32, %c0_i32_0 : i32, i32
  }
  func.func @transform_8(%arg0: i32) -> (i32, i32) {
    %c0_i32 = arith.constant 0 : i32
    %c0_i32_0 = arith.constant 0 : i32
    %c0_i32_1 = arith.constant 0 : i32
    return %c0_i32, %c0_i32_0 : i32, i32
  }
  func.func @transform_9(%arg0: i32) -> (i32, i32) {
    %c0_i32 = arith.constant 0 : i32
    %c0_i32_0 = arith.constant 0 : i32
    %c0_i32_1 = arith.constant 0 : i32
    return %c0_i32, %c0_i32_0 : i32, i32
  }
  func.func @transform_10(%arg0: i32) -> (i32, i32) {
    %c0_i32 = arith.constant 0 : i32
    %c0_i32_0 = arith.constant 0 : i32
    return %arg0, %c0_i32 : i32, i32
  }
  func.func @transform_11(%arg0: i32) -> (i32, i32) {
    %c0_i32 = arith.constant 0 : i32
    %c0_i32_0 = arith.constant 0 : i32
    return %arg0, %c0_i32 : i32, i32
  }
}

</mosaic_0001>

<llo_original>
// kernel: cognition_forward.1
$region0: #{cognition_forward.1}
  #allocation0 [shape = 'u32[]', space=smem, size = 0x4, offset = 0x4, fixed_abs, tag = 'smem constant byte address 0x4 - core index']
  #allocation1 [shape = 'u32[144,128]{1,0:T(1,128)}', space=vmem, size = 0x12000, scoped, tag = 'internal scratch']
  %s0 = inlined_call_operand.vmem [shape: f32[512,32], index: 0, kind: input, shape index: {}]
  %s1 = inlined_call_operand.vmem [shape: f32[512,128], index: 1, kind: input, shape index: {}]
  %s2 = inlined_call_operand.vmem [shape: f32[32,256], index: 2, kind: input, shape index: {}]
  %s3 = inlined_call_operand.vmem [shape: f32[1,256], index: 3, kind: input, shape index: {}]
  %s4 = inlined_call_operand.vmem [shape: bf16[128,128], index: 4, kind: input, shape index: {}]
  %s5 = inlined_call_operand.vmem [shape: f32[1,128], index: 5, kind: input, shape index: {}]
  %s6 = inlined_call_operand.vmem [shape: bf16[128,128], index: 6, kind: input, shape index: {}]
  %s7 = inlined_call_operand.vmem [shape: f32[1,128], index: 7, kind: input, shape index: {}]
  %s8 = inlined_call_operand.vmem [shape: bf16[128,10], index: 8, kind: input, shape index: {}]
  %s9 = inlined_call_operand.vmem [shape: f32[1,10], index: 9, kind: input, shape index: {}]
  %s10 = inlined_call_operand.vmem [shape: f32[512,10], index: 10, kind: output, shape index: {0}]
  %s11 = inlined_call_operand.hbm [shape: f32[512,128], index: 11, kind: output, shape index: {1}]
  %12 = xla_tuple %s10, %s11
  %s13 = sld [smem:[#allocation0]]
  $region81: #{cognition_forward.1} parent=0
    _
  %s15 = ssub.s32 1, %s13
  %s16 = scalar_select 0, %s15, %s13
  $region1: #{cognition_forward.1} parent=0
    #allocation2 [shape = 'u8[262144]{0}', space=vmem, size = 0x40000, scoped, tag = 'output window, operand 1']
    #allocation3 [shape = 's32[2]{0}', space=sflag, size = 0x8, scoped, tag = 'scoped memory for cognition_forward.1']
    %17 = vsyncpa [#allocation3], 0
    %s18 = scalar_lea.sflag [#allocation3], 1
    %19 = vsyncpa %s18, 0
    loop: start=0, step=1, limit=4
    $region2: #{cognition_forward.1} parent=1 // loop_pre_header
      _
    $region3: #{cognition_forward.1} parent=1 // loop_header
      %s21 = sphi 0, %s25
      %p22 = scmp.ge.s32.totalorder %s21, 4
      %s31 = sphi 0, %s33
      %s34 = sphi 0, %s31
      %s35 = sphi 0, %s34
      %s51 = sphi 0, %s35
      %s57 = sphi 0, %s59
      %s60 = sphi 0, %s57
      %s61 = sphi 0, %s60
      %s77 = sphi 0, %s61
      %s81 = sphi 0, %s81
      %s83 = sphi 0, %s81
      %s84 = sphi 0, %s83
      %s98 = sphi 0, %s84
      %s102 = sphi 0, %s102
      %s104 = sphi 0, %s102
      %s105 = sphi 0, %s104
      %s119 = sphi 0, %s105
      %s123 = sphi 0, %s123
      %s125 = sphi 0, %s123
      %s126 = sphi 0, %s125
      %s140 = sphi 0, %s126
      %s144 = sphi 0, %s144
      %s146 = sphi 0, %s144
      %s147 = sphi 0, %s146
      %s161 = sphi 0, %s147
      %s165 = sphi 0, %s165
      %s167 = sphi 0, %s165
      %s168 = sphi 0, %s167
      %s182 = sphi 0, %s168
      %s186 = sphi 0, %s186
      %s188 = sphi 0, %s186
      %s189 = sphi 0, %s188
      %s203 = sphi 0, %s189
      %s207 = sphi 0, %s207
      %s209 = sphi 0, %s207
      %s210 = sphi 0, %s209
      %s224 = sphi 0, %s210
      %s228 = sphi 0, %s228
      %s230 = sphi 0, %s228
      %s231 = sphi 0, %s230
      %s245 = sphi 0, %s231
      %s251 = sphi 0, %s253
      %s254 = sphi 0, %s251
      %s255 = sphi 0, %s254
      %s271 = sphi 0, %s255
      %s277 = sphi 0, %s279
      %s280 = sphi 0, %s277
      %s281 = sphi 0, %s280
      %s297 = sphi 0, %s281
    $region4: #{cognition_forward.1} parent=1 // loop_header_branch
      %24 = sbr.rel (%p22) target = $region8
    $region5: #{cognition_forward.1} parent=1 // loop_body
      %s26 = ssub.s32 %s21, 1
      %s27 = ssub.s32 %s21, 2
      %s28 = sadd.s32 %s21, 1
      %s29 = ssub.s32 %s21, %s28
      %p30 = scmp.eq.s32.totalorder %s29, 0
      %s32 = sadd.s32 %s31, 1
      %s33 = scalar_select %p30, %s31, %s32
      %p36 = pneg %p30
      %p37 = scmp.eq.s32.totalorder %s21, 1
      %p38 = por %p36, %p37
      %p39 = scmp.ne.s32.totalorder %s31, %s34
      %p40 = scmp.eq.s32.totalorder %s21, 0
      %p41 = por %p39, %p40
      %p42 = scmp.ne.s32.totalorder %s31, %s34
      %p43 = scmp.eq.s32.totalorder %s26, 1
      %p44 = por %p42, %p43
      %p45 = scmp.ne.s32.totalorder %s34, %s35
      %p46 = scmp.eq.s32.totalorder %s26, 0
      %p47 = por %p45, %p46
      %p48 = scmp.ne.s32.totalorder %s34, %s35
      %p49 = scmp.eq.s32.totalorder %s27, 1
      %p50 = por %p48, %p49
      %p52 = scmp.ne.s32.totalorder %s35, %s51
      %p53 = scmp.eq.s32.totalorder %s27, 0
      %p54 = por %p52, %p53
      %s55 = ssub.s32 %s21, %s28
      %p56 = scmp.eq.s32.totalorder %s55, 0
      %s58 = sadd.s32 %s57, 1
      %s59 = scalar_select %p56, %s57, %s58
      %p62 = pneg %p56
      %p63 = scmp.eq.s32.totalorder %s21, 1
      %p64 = por %p62, %p63
      %p65 = scmp.ne.s32.totalorder %s57, %s60
      %p66 = scmp.eq.s32.totalorder %s21, 0
      %p67 = por %p65, %p66
      %p68 = scmp.ne.s32.totalorder %s57, %s60
      %p69 = scmp.eq.s32.totalorder %s26, 1
      %p70 = por %p68, %p69
      %p71 = scmp.ne.s32.totalorder %s60, %s61
      %p72 = scmp.eq.s32.totalorder %s26, 0
      %p73 = por %p71, %p72
      %p74 = scmp.ne.s32.totalorder %s60, %s61
      %p75 = scmp.eq.s32.totalorder %s27, 1
      %p76 = por %p74, %p75
      %p78 = scmp.ne.s32.totalorder %s61, %s77
      %p79 = scmp.eq.s32.totalorder %s27, 0
      %p80 = por %p78, %p79
      %s82 = sadd.s32 %s81, 1
      %p85 = scmp.eq.s32.totalorder %s21, 1
      %p86 = scmp.ne.s32.totalorder %s81, %s83
      %p87 = scmp.eq.s32.totalorder %s21, 0
      %p88 = por %p86, %p87
      %p89 = scmp.ne.s32.totalorder %s81, %s83
      %p90 = scmp.eq.s32.totalorder %s26, 1
      %p91 = por %p89, %p90
      %p92 = scmp.ne.s32.totalorder %s83, %s84
      %p93 = scmp.eq.s32.totalorder %s26, 0
      %p94 = por %p92, %p93
      %p95 = scmp.ne.s32.totalorder %s83, %s84
      %p96 = scmp.eq.s32.totalorder %s27, 1
      %p97 = por %p95, %p96
      %p99 = scmp.ne.s32.totalorder %s84, %s98
      %p100 = scmp.eq.s32.totalorder %s27, 0
      %p101 = por %p99, %p100
      %s103 = sadd.s32 %s102, 1
      %p106 = scmp.eq.s32.totalorder %s21, 1
      %p107 = scmp.ne.s32.totalorder %s102, %s104
      %p108 = scmp.eq.s32.totalorder %s21, 0
      %p109 = por %p107, %p108
      %p110 = scmp.ne.s32.totalorder %s102, %s104
      %p111 = scmp.eq.s32.totalorder %s26, 1
      %p112 = por %p110, %p111
      %p113 = scmp.ne.s32.totalorder %s104, %s105
      %p114 = scmp.eq.s32.totalorder %s26, 0
      %p115 = por %p113, %p114
      %p116 = scmp.ne.s32.totalorder %s104, %s105
      %p117 = scmp.eq.s32.totalorder %s27, 1
      %p118 = por %p116, %p117
      %p120 = scmp.ne.s32.totalorder %s105, %s119
      %p121 = scmp.eq.s32.totalorder %s27, 0
      %p122 = por %p120, %p121
      %s124 = sadd.s32 %s123, 1
      %p127 = scmp.eq.s32.totalorder %s21, 1
      %p128 = scmp.ne.s32.totalorder %s123, %s125
      %p129 = scmp.eq.s32.totalorder %s21, 0
      %p130 = por %p128, %p129
      %p131 = scmp.ne.s32.totalorder %s123, %s125
      %p132 = scmp.eq.s32.totalorder %s26, 1
      %p133 = por %p131, %p132
      %p134 = scmp.ne.s32.totalorder %s125, %s126
      %p135 = scmp.eq.s32.totalorder %s26, 0
      %p136 = por %p134, %p135
      %p137 = scmp.ne.s32.totalorder %s125, %s126
      %p138 = scmp.eq.s32.totalorder %s27, 1
      %p139 = por %p137, %p138
      %p141 = scmp.ne.s32.totalorder %s126, %s140
      %p142 = scmp.eq.s32.totalorder %s27, 0
      %p143 = por %p141, %p142
      %s145 = sadd.s32 %s144, 1
      %p148 = scmp.eq.s32.totalorder %s21, 1
      %p149 = scmp.ne.s32.totalorder %s144, %s146
      %p150 = scmp.eq.s32.totalorder %s21, 0
      %p151 = por %p149, %p150
      %p152 = scmp.ne.s32.totalorder %s144, %s146
      %p153 = scmp.eq.s32.totalorder %s26, 1
      %p154 = por %p152, %p153
      %p155 = scmp.ne.s32.totalorder %s146, %s147
      %p156 = scmp.eq.s32.totalorder %s26, 0
      %p157 = por %p155, %p156
      %p158 = scmp.ne.s32.totalorder %s146, %s147
      %p159 = scmp.eq.s32.totalorder %s27, 1
      %p160 = por %p158, %p159
      %p162 = scmp.ne.s32.totalorder %s147, %s161
      %p163 = scmp.eq.s32.totalorder %s27, 0
      %p164 = por %p162, %p163
      %s166 = sadd.s32 %s165, 1
      %p169 = scmp.eq.s32.totalorder %s21, 1
      %p170 = scmp.ne.s32.totalorder %s165, %s167
      %p171 = scmp.eq.s32.totalorder %s21, 0
      %p172 = por %p170, %p171
      %p173 = scmp.ne.s32.totalorder %s165, %s167
      %p174 = scmp.eq.s32.totalorder %s26, 1
      %p175 = por %p173, %p174
      %p176 = scmp.ne.s32.totalorder %s167, %s168
      %p177 = scmp.eq.s32.totalorder %s26, 0
      %p178 = por %p176, %p177
      %p179 = scmp.ne.s32.totalorder %s167, %s168
      %p180 = scmp.eq.s32.totalorder %s27, 1
      %p181 = por %p179, %p180
      %p183 = scmp.ne.s32.totalorder %s168, %s182
      %p184 = scmp.eq.s32.totalorder %s27, 0
      %p185 = por %p183, %p184
      %s187 = sadd.s32 %s186, 1
      %p190 = scmp.eq.s32.totalorder %s21, 1
      %p191 = scmp.ne.s32.totalorder %s186, %s188
      %p192 = scmp.eq.s32.totalorder %s21, 0
      %p193 = por %p191, %p192
      %p194 = scmp.ne.s32.totalorder %s186, %s188
      %p195 = scmp.eq.s32.totalorder %s26, 1
      %p196 = por %p194, %p195
      %p197 = scmp.ne.s32.totalorder %s188, %s189
      %p198 = scmp.eq.s32.totalorder %s26, 0
      %p199 = por %p197, %p198
      %p200 = scmp.ne.s32.totalorder %s188, %s189
      %p201 = scmp.eq.s32.totalorder %s27, 1
      %p202 = por %p200, %p201
      %p204 = scmp.ne.s32.totalorder %s189, %s203
      %p205 = scmp.eq.s32.totalorder %s27, 0
      %p206 = por %p204, %p205
      %s208 = sadd.s32 %s207, 1
      %p211 = scmp.eq.s32.totalorder %s21, 1
      %p212 = scmp.ne.s32.totalorder %s207, %s209
      %p213 = scmp.eq.s32.totalorder %s21, 0
      %p214 = por %p212, %p213
      %p215 = scmp.ne.s32.totalorder %s207, %s209
      %p216 = scmp.eq.s32.totalorder %s26, 1
      %p217 = por %p215, %p216
      %p218 = scmp.ne.s32.totalorder %s209, %s210
      %p219 = scmp.eq.s32.totalorder %s26, 0
      %p220 = por %p218, %p219
      %p221 = scmp.ne.s32.totalorder %s209, %s210
      %p222 = scmp.eq.s32.totalorder %s27, 1
      %p223 = por %p221, %p222
      %p225 = scmp.ne.s32.totalorder %s210, %s224
      %p226 = scmp.eq.s32.totalorder %s27, 0
      %p227 = por %p225, %p226
      %s229 = sadd.s32 %s228, 1
      %p232 = scmp.eq.s32.totalorder %s21, 1
      %p233 = scmp.ne.s32.totalorder %s228, %s230
      %p234 = scmp.eq.s32.totalorder %s21, 0
      %p235 = por %p233, %p234
      %p236 = scmp.ne.s32.totalorder %s228, %s230
      %p237 = scmp.eq.s32.totalorder %s26, 1
      %p238 = por %p236, %p237
      %p239 = scmp.ne.s32.totalorder %s230, %s231
      %p240 = scmp.eq.s32.totalorder %s26, 0
      %p241 = por %p239, %p240
      %p242 = scmp.ne.s32.totalorder %s230, %s231
      %p243 = scmp.eq.s32.totalorder %s27, 1
      %p244 = por %p242, %p243
      %p246 = scmp.ne.s32.totalorder %s231, %s245
      %p247 = scmp.eq.s32.totalorder %s27, 0
      %p248 = por %p246, %p247
      %s249 = ssub.s32 %s21, %s28
      %p250 = scmp.eq.s32.totalorder %s249, 0
      %s252 = sadd.s32 %s251, 1
      %s253 = scalar_select %p250, %s251, %s252
      %p256 = pneg %p250
      %p257 = scmp.eq.s32.totalorder %s21, 1
      %p258 = por %p256, %p257
      %p259 = scmp.ne.s32.totalorder %s251, %s254
      %p260 = scmp.eq.s32.totalorder %s21, 0
      %p261 = por %p259, %p260
      %p262 = scmp.ne.s32.totalorder %s251, %s254
      %p263 = scmp.eq.s32.totalorder %s26, 1
      %p264 = por %p262, %p263
      %p265 = scmp.ne.s32.totalorder %s254, %s255
      %p266 = scmp.eq.s32.totalorder %s26, 0
      %p267 = por %p265, %p266
      %p268 = scmp.ne.s32.totalorder %s254, %s255
      %p269 = scmp.eq.s32.totalorder %s27, 1
      %p270 = por %p268, %p269
      %p272 = scmp.ne.s32.totalorder %s255, %s271
      %p273 = scmp.eq.s32.totalorder %s27, 0
      %p274 = por %p272, %p273
      %s275 = ssub.s32 %s21, %s28
      %p276 = scmp.eq.s32.totalorder %s275, 0
      %s278 = sadd.s32 %s277, 1
      %s279 = scalar_select %p276, %s277, %s278
      %p282 = pneg %p276
      %p283 = scmp.eq.s32.totalorder %s21, 1
      %p284 = por %p282, %p283
      %p285 = scmp.ne.s32.totalorder %s277, %s280
      %p286 = scmp.eq.s32.totalorder %s21, 0
      %p287 = por %p285, %p286
      %p288 = scmp.ne.s32.totalorder %s277, %s280
      %p289 = scmp.eq.s32.totalorder %s26, 1
      %p290 = por %p288, %p289
      %p291 = scmp.ne.s32.totalorder %s280, %s281
      %p292 = scmp.eq.s32.totalorder %s26, 0
      %p293 = por %p291, %p292
      %p294 = scmp.ne.s32.totalorder %s280, %s281
      %p295 = scmp.eq.s32.totalorder %s27, 1
      %p296 = por %p294, %p295
      %p298 = scmp.ne.s32.totalorder %s281, %s297
      %p299 = scmp.eq.s32.totalorder %s27, 0
      %p300 = por %p298, %p299
      %p301 = scmp.le.s32.totalorder 1, %s21
      %p302 = scmp.lt.s32.totalorder %s21, 3
      %p303 = pnand %p301, %p302
      %p304 = pneg %p303
      // Predicated region
      $region9: #{cognition_forward.1} parent=5 // pred_check
        _
      $region10: #{cognition_forward.1} parent=5 // pred_check_branch
        %306 = sbr.rel (%p303) target = $region12
      $region11: #{cognition_forward.1} parent=5 // pred_region
        %s307 = ssub.s32 %s21, 1
        // Predicated region
        $region13: #{cognition_forward.1} parent=11 // pred_check
          %p308 = pneg %p94
        $region14: #{cognition_forward.1} parent=11 // pred_check_branch
          %310 = sbr.rel (%p308) target = $region16
        $region15: #{cognition_forward.1} parent=11 // pred_region
          _
        $region16: #{cognition_forward.1} parent=11 // pred_fallthru
          _
        // Predicated region
        $region17: #{cognition_forward.1} parent=11 // pred_check
          %p311 = pneg %p115
        $region18: #{cognition_forward.1} parent=11 // pred_check_branch
          %313 = sbr.rel (%p311) target = $region20
        $region19: #{cognition_forward.1} parent=11 // pred_region
          _
        $region20: #{cognition_forward.1} parent=11 // pred_fallthru
          _
        // Predicated region
        $region21: #{cognition_forward.1} parent=11 // pred_check
          %p314 = pneg %p136
        $region22: #{cognition_forward.1} parent=11 // pred_check_branch
          %316 = sbr.rel (%p314) target = $region24
        $region23: #{cognition_forward.1} parent=11 // pred_region
          _
        $region24: #{cognition_forward.1} parent=11 // pred_fallthru
          _
        // Predicated region
        $region25: #{cognition_forward.1} parent=11 // pred_check
          %p317 = pneg %p157
        $region26: #{cognition_forward.1} parent=11 // pred_check_branch
          %319 = sbr.rel (%p317) target = $region28
        $region27: #{cognition_forward.1} parent=11 // pred_region
          _
        $region28: #{cognition_forward.1} parent=11 // pred_fallthru
          _
        // Predicated region
        $region29: #{cognition_forward.1} parent=11 // pred_check
          %p320 = pneg %p178
        $region30: #{cognition_forward.1} parent=11 // pred_check_branch
          %322 = sbr.rel (%p320) target = $region32
        $region31: #{cognition_forward.1} parent=11 // pred_region
          _
        $region32: #{cognition_forward.1} parent=11 // pred_fallthru
          _
        // Predicated region
        $region33: #{cognition_forward.1} parent=11 // pred_check
          %p323 = pneg %p199
        $region34: #{cognition_forward.1} parent=11 // pred_check_branch
          %325 = sbr.rel (%p323) target = $region36
        $region35: #{cognition_forward.1} parent=11 // pred_region
          _
        $region36: #{cognition_forward.1} parent=11 // pred_fallthru
          _
        // Predicated region
        $region37: #{cognition_forward.1} parent=11 // pred_check
          %p326 = pneg %p220
        $region38: #{cognition_forward.1} parent=11 // pred_check_branch
          %328 = sbr.rel (%p326) target = $region40
        $region39: #{cognition_forward.1} parent=11 // pred_region
          _
        $region40: #{cognition_forward.1} parent=11 // pred_fallthru
          _
        // Predicated region
        $region41: #{cognition_forward.1} parent=11 // pred_check
          %p329 = pneg %p241
        $region42: #{cognition_forward.1} parent=11 // pred_check_branch
          %331 = sbr.rel (%p329) target = $region44
        $region43: #{cognition_forward.1} parent=11 // pred_region
          _
        $region44: #{cognition_forward.1} parent=11 // pred_fallthru
          _
      $region12: #{cognition_forward.1} parent=5 // pred_fallthru
        _
      %p332 = scmp.lt.s32.totalorder %s21, 2
      // Predicated region
      $region45: #{cognition_forward.1} parent=5 // pred_check
        %p333 = pneg %p332
      $region46: #{cognition_forward.1} parent=5 // pred_check_branch
        %335 = sbr.rel (%p333) target = $region48
      $region47: #{cognition_forward.1} parent=5 // pred_region
        // Predicated region
        $region49: #{cognition_forward.1} parent=47 // pred_check
          %p336 = pneg %p41
        $region50: #{cognition_forward.1} parent=47 // pred_check_branch
          %338 = sbr.rel (%p336) target = $region52
        $region51: #{cognition_forward.1} parent=47 // pred_region
          %s339 = smul.u32 32, %s21
          %p340 = scmp.lt.s32.totalorder %s339, 63
          %s341 = scalar_select %p340, %s339, 63
          %s342 = smul.addr %s341, 8
          %s343 = scalar_lea.vmem %s0, %s342
          %s344 = smul.u32 32, %s21
        $region52: #{cognition_forward.1} parent=47 // pred_fallthru
          _
        // Predicated region
        $region53: #{cognition_forward.1} parent=47 // pred_check
          %p345 = pneg %p67
        $region54: #{cognition_forward.1} parent=47 // pred_check_branch
          %347 = sbr.rel (%p345) target = $region56
        $region55: #{cognition_forward.1} parent=47 // pred_region
          %s348 = smul.u32 32, %s21
          %p349 = scmp.lt.s32.totalorder %s348, 63
          %s350 = scalar_select %p349, %s348, 63
          %s351 = smul.addr %s350, 8
          %s352 = scalar_lea.vmem %s1, %s351
          %s353 = smul.u32 32, %s21
        $region56: #{cognition_forward.1} parent=47 // pred_fallthru
          _
      $region48: #{cognition_forward.1} parent=5 // pred_fallthru
        _
      %p354 = scmp.le.s32.totalorder 1, %s21
      %p355 = scmp.lt.s32.totalorder %s21, 3
      %p356 = pnand %p354, %p355
      %p357 = pneg %p356
      // Predicated region
      $region57: #{cognition_forward.1} parent=5 // pred_check
        _
      $region58: #{cognition_forward.1} parent=5 // pred_check_branch
        %359 = sbr.rel (%p356) target = $region60
      $region59: #{cognition_forward.1} parent=5 // pred_region
        %s360 = ssub.s32 %s21, 1
        %s361 = smul.u32 32, %s26
        %p362 = scmp.lt.s32.totalorder %s361, 63
        %s363 = scalar_select %p362, %s361, 63
        %s364 = smul.addr %s363, 8
        %s365 = scalar_lea.vmem %s0, %s364
        %p366 = pneg %p47
        %p367 = pneg %p44
        %s368 = smul.u32 32, %s26
        %p369 = scmp.lt.s32.totalorder %s368, 63
        %s370 = scalar_select %p369, %s368, 63
        %s371 = smul.addr %s370, 8
        %s372 = scalar_lea.vmem %s1, %s371
        %p373 = pneg %p73
        %p374 = pneg %p70
        %p375 = pneg %p94
        %p376 = pneg %p91
        %p377 = pneg %p115
        %p378 = pneg %p112
        %p379 = pneg %p136
        %p380 = pneg %p133
        %p381 = pneg %p157
        %p382 = pneg %p154
        %p383 = pneg %p178
        %p384 = pneg %p175
        %p385 = pneg %p199
        %p386 = pneg %p196
        %p387 = pneg %p220
        %p388 = pneg %p217
        %p389 = pneg %p241
        %p390 = pneg %p238
        %p391 = pneg %p267
        %p392 = pneg %p264
        %s393 = smul.u32 32, %s26
        %p394 = scmp.lt.s32.totalorder %s393, 63
        %s395 = scalar_select %p394, %s393, 63
        %s396 = smul.addr %s395, 8
        %s397 = scalar_lea.vmem %s10, %s396
        %p398 = pneg %p293
        %p399 = pneg %p290
        %s400 = sand.u32 %s280, 1
        %s401 = scalar_lea.sflag [#allocation3], %s400
        %s402 = sand.u32 %s280, 1
        %s403 = smul.addr %s402, 256
        %s404 = scalar_lea.vmem [#allocation2], %s403
        %s405 = smul.u32 32, %s26
        %p406 = scmp.lt.s32.totalorder %s405, 63
        %s407 = scalar_select %p406, %s405, 63
        %s408 = smul.addr %s407, 8
        %s409 = scalar_lea.vmem %s0, %s408
        %s410 = smul.u32 32, %s26
        %s411 = smul.u32 32, %s26
        %p412 = scmp.lt.s32.totalorder %s411, 63
        %s413 = scalar_select %p412, %s411, 63
        %s414 = smul.addr %s413, 8
        %s415 = scalar_lea.vmem %s1, %s414
        %s416 = smul.u32 32, %s26
        %s417 = smul.u32 32, %s26
        %p418 = scmp.lt.s32.totalorder %s417, 63
        %s419 = scalar_select %p418, %s417, 63
        %s420 = smul.addr %s419, 8
        %s421 = scalar_lea.vmem %s10, %s420
        %s422 = smul.u32 32, %s26
        %s423 = smul.u32 32, %s26
        %v425 = vld [vmem:[%s409] sm:$0xff]
        %v426 = vld [vmem:[%s409 + $0x8] sm:$0xff]
        %v427 = vld [vmem:[%s409 + $0x10] sm:$0xff]
        %v428 = vld [vmem:[%s409 + $0x18] sm:$0xff]
        %v429 = vld [vmem:[%s409 + $0x20] sm:$0xff]
        %v430 = vld [vmem:[%s409 + $0x28] sm:$0xff]
        %v431 = vld [vmem:[%s409 + $0x30] sm:$0xff]
        %v432 = vld [vmem:[%s409 + $0x38] sm:$0xff]
        %v433 = vld [vmem:[%s409 + $0x40] sm:$0xff]
        %v434 = vld [vmem:[%s409 + $0x48] sm:$0xff]
        %v435 = vld [vmem:[%s409 + $0x50] sm:$0xff]
        %v436 = vld [vmem:[%s409 + $0x58] sm:$0xff]
        %v437 = vld [vmem:[%s409 + $0x60] sm:$0xff]
        %v438 = vld [vmem:[%s409 + $0x68] sm:$0xff]
        %v439 = vld [vmem:[%s409 + $0x70] sm:$0xff]
        %v440 = vld [vmem:[%s409 + $0x78] sm:$0xff]
        %v441 = vld [vmem:[%s409 + $0x80] sm:$0xff]
        %v442 = vld [vmem:[%s409 + $0x88] sm:$0xff]
        %v443 = vld [vmem:[%s409 + $0x90] sm:$0xff]
        %v444 = vld [vmem:[%s409 + $0x98] sm:$0xff]
        %v445 = vld [vmem:[%s409 + $0xa0] sm:$0xff]
        %v446 = vld [vmem:[%s409 + $0xa8] sm:$0xff]
        %v447 = vld [vmem:[%s409 + $0xb0] sm:$0xff]
        %v448 = vld [vmem:[%s409 + $0xb8] sm:$0xff]
        %v449 = vld [vmem:[%s409 + $0xc0] sm:$0xff]
        %v450 = vld [vmem:[%s409 + $0xc8] sm:$0xff]
        %v451 = vld [vmem:[%s409 + $0xd0] sm:$0xff]
        %v452 = vld [vmem:[%s409 + $0xd8] sm:$0xff]
        %v453 = vld [vmem:[%s409 + $0xe0] sm:$0xff]
        %v454 = vld [vmem:[%s409 + $0xe8] sm:$0xff]
        %v455 = vld [vmem:[%s409 + $0xf0] sm:$0xff]
        %v456 = vld [vmem:[%s409 + $0xf8] sm:$0xff]
        %v457 = vld [vmem:[%s415] sm:$0xff]
        %v458 = vld [vmem:[%s415 + $0x8] sm:$0xff]
        %v459 = vld [vmem:[%s415 + $0x10] sm:$0xff]
        %v460 = vld [vmem:[%s415 + $0x18] sm:$0xff]
        %v461 = vld [vmem:[%s415 + $0x20] sm:$0xff]
        %v462 = vld [vmem:[%s415 + $0x28] sm:$0xff]
        %v463 = vld [vmem:[%s415 + $0x30] sm:$0xff]
        %v464 = vld [vmem:[%s415 + $0x38] sm:$0xff]
        %v465 = vld [vmem:[%s415 + $0x40] sm:$0xff]
        %v466 = vld [vmem:[%s415 + $0x48] sm:$0xff]
        %v467 = vld [vmem:[%s415 + $0x50] sm:$0xff]
        %v468 = vld [vmem:[%s415 + $0x58] sm:$0xff]
        %v469 = vld [vmem:[%s415 + $0x60] sm:$0xff]
        %v470 = vld [vmem:[%s415 + $0x68] sm:$0xff]
        %v471 = vld [vmem:[%s415 + $0x70] sm:$0xff]
        %v472 = vld [vmem:[%s415 + $0x78] sm:$0xff]
        %v473 = vld [vmem:[%s415 + $0x80] sm:$0xff]
        %v474 = vld [vmem:[%s415 + $0x88] sm:$0xff]
        %v475 = vld [vmem:[%s415 + $0x90] sm:$0xff]
        %v476 = vld [vmem:[%s415 + $0x98] sm:$0xff]
        %v477 = vld [vmem:[%s415 + $0xa0] sm:$0xff]
        %v478 = vld [vmem:[%s415 + $0xa8] sm:$0xff]
        %v479 = vld [vmem:[%s415 + $0xb0] sm:$0xff]
        %v480 = vld [vmem:[%s415 + $0xb8] sm:$0xff]
        %v481 = vld [vmem:[%s415 + $0xc0] sm:$0xff]
        %v482 = vld [vmem:[%s415 + $0xc8] sm:$0xff]
        %v483 = vld [vmem:[%s415 + $0xd0] sm:$0xff]
        %v484 = vld [vmem:[%s415 + $0xd8] sm:$0xff]
        %v485 = vld [vmem:[%s415 + $0xe0] sm:$0xff]
        %v486 = vld [vmem:[%s415 + $0xe8] sm:$0xff]
        %v487 = vld [vmem:[%s415 + $0xf0] sm:$0xff]
        %v488 = vld [vmem:[%s415 + $0xf8] sm:$0xff]
        %v489 = vld [vmem:[%s2] sm:$0xff]
        %v490 = vld [vmem:[%s2 + $0x8] sm:$0xff]
        %v491 = vld [vmem:[%s2 + $0x10] sm:$0xff]
        %v492 = vld [vmem:[%s2 + $0x18] sm:$0xff]
        %v493 = vld [vmem:[%s2 + $0x20] sm:$0xff]
        %v494 = vld [vmem:[%s2 + $0x28] sm:$0xff]
        %v495 = vld [vmem:[%s2 + $0x30] sm:$0xff]
        %v496 = vld [vmem:[%s2 + $0x38] sm:$0xff]
        %v497 = vld [vmem:[%s3] sm:$0x3]
        %v499 = vlaneseq
        %v500 = vshrl.u32 %v499, 7
        %v501 = vsub.s32 0, %v500
        %v502 = vrot.slane %v497, %v501
        %v503 = vlaneseq
        %v504 = vshrl.u32 %v503, 7
        %v505 = vsub.s32 1, %v504
        %v506 = vrot.slane %v497, %v505
        %vm509 = vcmask 261120
        %v511 = vsel %vm509, %v425, 0
        %v514 = vsel %vm509, %v426, 0
        %v517 = vsel %vm509, %v427, 0
        %v520 = vsel %vm509, %v428, 0
        %v523 = vsel %vm509, %v429, 0
        %v526 = vsel %vm509, %v430, 0
        %v529 = vsel %vm509, %v431, 0
        %v532 = vsel %vm509, %v432, 0
        %v535 = vsel %vm509, %v433, 0
        %v538 = vsel %vm509, %v434, 0
        %v541 = vsel %vm509, %v435, 0
        %v544 = vsel %vm509, %v436, 0
        %v547 = vsel %vm509, %v437, 0
        %v550 = vsel %vm509, %v438, 0
        %v553 = vsel %vm509, %v439, 0
        %v556 = vsel %vm509, %v440, 0
        %v559 = vsel %vm509, %v441, 0
        %v562 = vsel %vm509, %v442, 0
        %v565 = vsel %vm509, %v443, 0
        %v568 = vsel %vm509, %v444, 0
        %v571 = vsel %vm509, %v445, 0
        %v574 = vsel %vm509, %v446, 0
        %v577 = vsel %vm509, %v447, 0
        %v580 = vsel %vm509, %v448, 0
        %v583 = vsel %vm509, %v449, 0
        %v586 = vsel %vm509, %v450, 0
        %v589 = vsel %vm509, %v451, 0
        %v592 = vsel %vm509, %v452, 0
        %v595 = vsel %vm509, %v453, 0
        %v598 = vsel %vm509, %v454, 0
        %v601 = vsel %vm509, %v455, 0
        %v604 = vsel %vm509, %v456, 0
        %606 = vmatprep.subr.mxu0 0.0
        %607 = vmatpush1.msra.mxu0 0.0
        %608 = vmatprep.subr.mxu0 0.0
        %609 = vmatpush1.msra.mxu0 0.0
        %610 = vmatprep.subr.mxu0 0.0
        %611 = vmatpush1.msra.mxu0 0.0
        %612 = vmatprep.subr.mxu0 0.0
        %613 = vmatpush1.msra.mxu0 0.0
        %614 = vmatprep.subr.mxu0 0.0
        %615 = vmatpush1.msra.mxu0 0.0
        %616 = vmatprep.subr.mxu0 0.0
        %617 = vmatpush1.msra.mxu0 0.0
        %618 = vmatprep.subr.mxu0 0.0
        %619 = vmatpush1.msra.mxu0 0.0
        %620 = vmatprep.subr.mxu0 0.0
        %621 = vmatpush1.msra.mxu0 0.0
        %622 = vmatprep.subr.mxu0 0.0
        %623 = vmatpush1.msra.mxu0 0.0
        %624 = vmatprep.subr.mxu0 0.0
        %625 = vmatpush1.msra.mxu0 0.0
        %626 = vmatprep.subr.mxu0 0.0
        %627 = vmatpush1.msra.mxu0 0.0
        %628 = vmatprep.subr.mxu0 0.0
        %629 = vmatpush1.msra.mxu0 0.0
        %630 = vmatprep.subr.mxu0 %v496
        %631 = vmatpush1.msra.mxu0 %v495
        %632 = vmatprep.subr.mxu0 %v494
        %633 = vmatpush1.msra.mxu0 %v493
        %634 = vmatprep.subr.mxu0 %v492
        %635 = vmatpush1.msra.mxu0 %v491
        %636 = vmatprep.subr.mxu0 %v490
        %637 = vmatpush1.msra.mxu0 %v489
        %638 = vmatprep.subr.mxu0 0.0
        %639 = vmatpush2.msra.mxu0 0.0
        %640 = vmatprep.subr.mxu0 0.0
        %641 = vmatpush2.msra.mxu0 0.0
        %642 = vmatprep.subr.mxu0 0.0
        %643 = vmatpush2.msra.mxu0 0.0
        %644 = vmatprep.subr.mxu0 0.0
        %645 = vmatpush2.msra.mxu0 0.0
        %646 = vmatprep.subr.mxu0 0.0
        %647 = vmatpush2.msra.mxu0 0.0
        %648 = vmatprep.subr.mxu0 0.0
        %649 = vmatpush2.msra.mxu0 0.0
        %650 = vmatprep.subr.mxu0 0.0
        %651 = vmatpush2.msra.mxu0 0.0
        %652 = vmatprep.subr.mxu0 0.0
        %653 = vmatpush2.msra.mxu0 0.0
        %654 = vmatprep.subr.mxu0 0.0
        %655 = vmatpush2.msra.mxu0 0.0
        %656 = vmatprep.subr.mxu0 0.0
        %657 = vmatpush2.msra.mxu0 0.0
        %658 = vmatprep.subr.mxu0 0.0
        %659 = vmatpush2.msra.mxu0 0.0
        %660 = vmatprep.subr.mxu0 0.0
        %661 = vmatpush2.msra.mxu0 0.0
        %662 = vmatprep.subr.mxu0 0.0
        %663 = vmatpush2.msra.mxu0 0.0
        %664 = vmatprep.subr.mxu0 0.0
        %665 = vmatpush2.msra.mxu0 0.0
        %666 = vmatprep.subr.mxu0 0.0
        %667 = vmatpush2.msra.mxu0 0.0
        %668 = vmatprep.subr.mxu0 0.0
        %669 = vmatpush2.msra.mxu0 0.0
        %670 = vmatprep.mubr.f32.mxu0 0.0
        %671 = vmatmul.mubr.f32.gmra.mxu0 %v511
        %v672 = vpop.f32.mrf.mxu0
        %v673 = vadd.f32 %v502, %v672
        %v674 = vpop.f32.mrf.mxu0
        %v675 = vadd.f32 %v506, %v674
        %676 = vmatprep.mubr.f32.mxu0 0.0
        %677 = vmatmul.mubr.f32.gmra.mxu0 %v514
        %v678 = vpop.f32.mrf.mxu0
        %v679 = vadd.f32 %v502, %v678
        %v680 = vpop.f32.mrf.mxu0
        %v681 = vadd.f32 %v506, %v680
        %682 = vmatprep.mubr.f32.mxu0 0.0
        %683 = vmatmul.mubr.f32.gmra.mxu0 %v517
        %v684 = vpop.f32.mrf.mxu0
        %v685 = vadd.f32 %v502, %v684
        %v686 = vpop.f32.mrf.mxu0
        %v687 = vadd.f32 %v506, %v686
        %688 = vmatprep.mubr.f32.mxu0 0.0
        %689 = vmatmul.mubr.f32.gmra.mxu0 %v520
        %v690 = vpop.f32.mrf.mxu0
        %v691 = vadd.f32 %v502, %v690
        %v692 = vpop.f32.mrf.mxu0
        %v693 = vadd.f32 %v506, %v692
        %694 = vmatprep.mubr.f32.mxu0 0.0
        %695 = vmatmul.mubr.f32.gmra.mxu0 %v523
        %v696 = vpop.f32.mrf.mxu0
        %v697 = vadd.f32 %v502, %v696
        %v698 = vpop.f32.mrf.mxu0
        %v699 = vadd.f32 %v506, %v698
        %700 = vmatprep.mubr.f32.mxu0 0.0
        %701 = vmatmul.mubr.f32.gmra.mxu0 %v526
        %v702 = vpop.f32.mrf.mxu0
        %v703 = vadd.f32 %v502, %v702
        %v704 = vpop.f32.mrf.mxu0
        %v705 = vadd.f32 %v506, %v704
        %706 = vmatprep.mubr.f32.mxu0 0.0
        %707 = vmatmul.mubr.f32.gmra.mxu0 %v529
        %v708 = vpop.f32.mrf.mxu0
        %v709 = vadd.f32 %v502, %v708
        %v710 = vpop.f32.mrf.mxu0
        %v711 = vadd.f32 %v506, %v710
        %712 = vmatprep.mubr.f32.mxu0 0.0
        %713 = vmatmul.mubr.f32.gmra.mxu0 %v532
        %v714 = vpop.f32.mrf.mxu0
        %v715 = vadd.f32 %v502, %v714
        %v716 = vpop.f32.mrf.mxu0
        %v717 = vadd.f32 %v506, %v716
        %718 = vmatprep.mubr.f32.mxu0 0.0
        %719 = vmatmul.mubr.f32.gmra.mxu0 %v535
        %v720 = vpop.f32.mrf.mxu0
        %v721 = vadd.f32 %v502, %v720
        %v722 = vpop.f32.mrf.mxu0
        %v723 = vadd.f32 %v506, %v722
        %724 = vmatprep.mubr.f32.mxu0 0.0
        %725 = vmatmul.mubr.f32.gmra.mxu0 %v538
        %v726 = vpop.f32.mrf.mxu0
        %v727 = vadd.f32 %v502, %v726
        %v728 = vpop.f32.mrf.mxu0
        %v729 = vadd.f32 %v506, %v728
        %730 = vmatprep.mubr.f32.mxu0 0.0
        %731 = vmatmul.mubr.f32.gmra.mxu0 %v541
        %v732 = vpop.f32.mrf.mxu0
        %v733 = vadd.f32 %v502, %v732
        %v734 = vpop.f32.mrf.mxu0
        %v735 = vadd.f32 %v506, %v734
        %736 = vmatprep.mubr.f32.mxu0 0.0
        %737 = vmatmul.mubr.f32.gmra.mxu0 %v544
        %v738 = vpop.f32.mrf.mxu0
        %v739 = vadd.f32 %v502, %v738
        %v740 = vpop.f32.mrf.mxu0
        %v741 = vadd.f32 %v506, %v740
        %742 = vmatprep.mubr.f32.mxu0 0.0
        %743 = vmatmul.mubr.f32.gmra.mxu0 %v547
        %v744 = vpop.f32.mrf.mxu0
        %v745 = vadd.f32 %v502, %v744
        %v746 = vpop.f32.mrf.mxu0
        %v747 = vadd.f32 %v506, %v746
        %748 = vmatprep.mubr.f32.mxu0 0.0
        %749 = vmatmul.mubr.f32.gmra.mxu0 %v550
        %v750 = vpop.f32.mrf.mxu0
        %v751 = vadd.f32 %v502, %v750
        %v752 = vpop.f32.mrf.mxu0
        %v753 = vadd.f32 %v506, %v752
        %754 = vmatprep.mubr.f32.mxu0 0.0
        %755 = vmatmul.mubr.f32.gmra.mxu0 %v553
        %v756 = vpop.f32.mrf.mxu0
        %v757 = vadd.f32 %v502, %v756
        %v758 = vpop.f32.mrf.mxu0
        %v759 = vadd.f32 %v506, %v758
        %760 = vmatprep.mubr.f32.mxu0 0.0
        %761 = vmatmul.mubr.f32.gmra.mxu0 %v556
        %v762 = vpop.f32.mrf.mxu0
        %v763 = vadd.f32 %v502, %v762
        %v764 = vpop.f32.mrf.mxu0
        %v765 = vadd.f32 %v506, %v764
        %766 = vmatprep.mubr.f32.mxu0 0.0
        %767 = vmatmul.mubr.f32.gmra.mxu0 %v559
        %v768 = vpop.f32.mrf.mxu0
        %v769 = vadd.f32 %v502, %v768
        %v770 = vpop.f32.mrf.mxu0
        %v771 = vadd.f32 %v506, %v770
        %772 = vmatprep.mubr.f32.mxu0 0.0
        %773 = vmatmul.mubr.f32.gmra.mxu0 %v562
        %v774 = vpop.f32.mrf.mxu0
        %v775 = vadd.f32 %v502, %v774
        %v776 = vpop.f32.mrf.mxu0
        %v777 = vadd.f32 %v506, %v776
        %778 = vmatprep.mubr.f32.mxu0 0.0
        %779 = vmatmul.mubr.f32.gmra.mxu0 %v565
        %v780 = vpop.f32.mrf.mxu0
        %v781 = vadd.f32 %v502, %v780
        %v782 = vpop.f32.mrf.mxu0
        %v783 = vadd.f32 %v506, %v782
        %784 = vmatprep.mubr.f32.mxu0 0.0
        %785 = vmatmul.mubr.f32.gmra.mxu0 %v568
        %v786 = vpop.f32.mrf.mxu0
        %v787 = vadd.f32 %v502, %v786
        %v788 = vpop.f32.mrf.mxu0
        %v789 = vadd.f32 %v506, %v788
        %790 = vmatprep.mubr.f32.mxu0 0.0
        %791 = vmatmul.mubr.f32.gmra.mxu0 %v571
        %v792 = vpop.f32.mrf.mxu0
        %v793 = vadd.f32 %v502, %v792
        %v794 = vpop.f32.mrf.mxu0
        %v795 = vadd.f32 %v506, %v794
        %796 = vmatprep.mubr.f32.mxu0 0.0
        %797 = vmatmul.mubr.f32.gmra.mxu0 %v574
        %v798 = vpop.f32.mrf.mxu0
        %v799 = vadd.f32 %v502, %v798
        %v800 = vpop.f32.mrf.mxu0
        %v801 = vadd.f32 %v506, %v800
        %802 = vmatprep.mubr.f32.mxu0 0.0
        %803 = vmatmul.mubr.f32.gmra.mxu0 %v577
        %v804 = vpop.f32.mrf.mxu0
        %v805 = vadd.f32 %v502, %v804
        %v806 = vpop.f32.mrf.mxu0
        %v807 = vadd.f32 %v506, %v806
        %808 = vmatprep.mubr.f32.mxu0 0.0
        %809 = vmatmul.mubr.f32.gmra.mxu0 %v580
        %v810 = vpop.f32.mrf.mxu0
        %v811 = vadd.f32 %v502, %v810
        %v812 = vpop.f32.mrf.mxu0
        %v813 = vadd.f32 %v506, %v812
        %814 = vmatprep.mubr.f32.mxu0 0.0
        %815 = vmatmul.mubr.f32.gmra.mxu0 %v583
        %v816 = vpop.f32.mrf.mxu0
        %v817 = vadd.f32 %v502, %v816
        %v818 = vpop.f32.mrf.mxu0
        %v819 = vadd.f32 %v506, %v818
        %820 = vmatprep.mubr.f32.mxu0 0.0
        %821 = vmatmul.mubr.f32.gmra.mxu0 %v586
        %v822 = vpop.f32.mrf.mxu0
        %v823 = vadd.f32 %v502, %v822
        %v824 = vpop.f32.mrf.mxu0
        %v825 = vadd.f32 %v506, %v824
        %826 = vmatprep.mubr.f32.mxu0 0.0
        %827 = vmatmul.mubr.f32.gmra.mxu0 %v589
        %v828 = vpop.f32.mrf.mxu0
        %v829 = vadd.f32 %v502, %v828
        %v830 = vpop.f32.mrf.mxu0
        %v831 = vadd.f32 %v506, %v830
        %832 = vmatprep.mubr.f32.mxu0 0.0
        %833 = vmatmul.mubr.f32.gmra.mxu0 %v592
        %v834 = vpop.f32.mrf.mxu0
        %v835 = vadd.f32 %v502, %v834
        %v836 = vpop.f32.mrf.mxu0
        %v837 = vadd.f32 %v506, %v836
        %838 = vmatprep.mubr.f32.mxu0 0.0
        %839 = vmatmul.mubr.f32.gmra.mxu0 %v595
        %v840 = vpop.f32.mrf.mxu0
        %v841 = vadd.f32 %v502, %v840
        %v842 = vpop.f32.mrf.mxu0
        %v843 = vadd.f32 %v506, %v842
        %844 = vmatprep.mubr.f32.mxu0 0.0
        %845 = vmatmul.mubr.f32.gmra.mxu0 %v598
        %v846 = vpop.f32.mrf.mxu0
        %v847 = vadd.f32 %v502, %v846
        %v848 = vpop.f32.mrf.mxu0
        %v849 = vadd.f32 %v506, %v848
        %850 = vmatprep.mubr.f32.mxu0 0.0
        %851 = vmatmul.mubr.f32.gmra.mxu0 %v601
        %v852 = vpop.f32.mrf.mxu0
        %v853 = vadd.f32 %v502, %v852
        %v854 = vpop.f32.mrf.mxu0
        %v855 = vadd.f32 %v506, %v854
        %856 = vmatprep.mubr.f32.mxu0 0.0
        %857 = vmatmul.mubr.f32.gmra.mxu0 %v604
        %v858 = vpop.f32.mrf.mxu0
        %v859 = vadd.f32 %v502, %v858
        %v860 = vpop.f32.mrf.mxu0
        %v861 = vadd.f32 %v506, %v860
        %862 = vdwg.mxu0
        %863 = vmax.xlane.f32.xlu0 %v673
        %v864 = vpop.xlane.xlu0 %863
        %865 = vmax.xlane.f32.xlu0 %v679
        %v866 = vpop.xlane.xlu0 %865
        %867 = vmax.xlane.f32.xlu0 %v685
        %v868 = vpop.xlane.xlu0 %867
        %869 = vmax.xlane.f32.xlu0 %v691
        %v870 = vpop.xlane.xlu0 %869
        %871 = vmax.xlane.f32.xlu0 %v697
        %v872 = vpop.xlane.xlu0 %871
        %873 = vmax.xlane.f32.xlu0 %v703
        %v874 = vpop.xlane.xlu0 %873
        %875 = vmax.xlane.f32.xlu0 %v709
        %v876 = vpop.xlane.xlu0 %875
        %877 = vmax.xlane.f32.xlu0 %v715
        %v878 = vpop.xlane.xlu0 %877
        %879 = vmax.xlane.f32.xlu0 %v721
        %v880 = vpop.xlane.xlu0 %879
        %881 = vmax.xlane.f32.xlu0 %v727
        %v882 = vpop.xlane.xlu0 %881
        %883 = vmax.xlane.f32.xlu0 %v733
        %v884 = vpop.xlane.xlu0 %883
        %885 = vmax.xlane.f32.xlu0 %v739
        %v886 = vpop.xlane.xlu0 %885
        %887 = vmax.xlane.f32.xlu0 %v745
        %v888 = vpop.xlane.xlu0 %887
        %889 = vmax.xlane.f32.xlu0 %v751
        %v890 = vpop.xlane.xlu0 %889
        %891 = vmax.xlane.f32.xlu0 %v757
        %v892 = vpop.xlane.xlu0 %891
        %893 = vmax.xlane.f32.xlu0 %v763
        %v894 = vpop.xlane.xlu0 %893
        %895 = vmax.xlane.f32.xlu0 %v769
        %v896 = vpop.xlane.xlu0 %895
        %897 = vmax.xlane.f32.xlu0 %v775
        %v898 = vpop.xlane.xlu0 %897
        %899 = vmax.xlane.f32.xlu0 %v781
        %v900 = vpop.xlane.xlu0 %899
        %901 = vmax.xlane.f32.xlu0 %v787
        %v902 = vpop.xlane.xlu0 %901
        %903 = vmax.xlane.f32.xlu0 %v793
        %v904 = vpop.xlane.xlu0 %903
        %905 = vmax.xlane.f32.xlu0 %v799
        %v906 = vpop.xlane.xlu0 %905
        %907 = vmax.xlane.f32.xlu0 %v805
        %v908 = vpop.xlane.xlu0 %907
        %909 = vmax.xlane.f32.xlu0 %v811
        %v910 = vpop.xlane.xlu0 %909
        %911 = vmax.xlane.f32.xlu0 %v817
        %v912 = vpop.xlane.xlu0 %911
        %913 = vmax.xlane.f32.xlu0 %v823
        %v914 = vpop.xlane.xlu0 %913
        %915 = vmax.xlane.f32.xlu0 %v829
        %v916 = vpop.xlane.xlu0 %915
        %917 = vmax.xlane.f32.xlu0 %v835
        %v918 = vpop.xlane.xlu0 %917
        %919 = vmax.xlane.f32.xlu0 %v841
        %v920 = vpop.xlane.xlu0 %919
        %921 = vmax.xlane.f32.xlu0 %v847
        %v922 = vpop.xlane.xlu0 %921
        %923 = vmax.xlane.f32.xlu0 %v853
        %v924 = vpop.xlane.xlu0 %923
        %925 = vmax.xlane.f32.xlu0 %v859
        %v926 = vpop.xlane.xlu0 %925
        %v927 = vsub.f32 %v673, %v864
        %v928 = vsub.f32 %v679, %v866
        %v929 = vsub.f32 %v685, %v868
        %v930 = vsub.f32 %v691, %v870
        %v931 = vsub.f32 %v697, %v872
        %v932 = vsub.f32 %v703, %v874
        %v933 = vsub.f32 %v709, %v876
        %v934 = vsub.f32 %v715, %v878
        %v935 = vsub.f32 %v721, %v880
        %v936 = vsub.f32 %v727, %v882
        %v937 = vsub.f32 %v733, %v884
        %v938 = vsub.f32 %v739, %v886
        %v939 = vsub.f32 %v745, %v888
        %v940 = vsub.f32 %v751, %v890
        %v941 = vsub.f32 %v757, %v892
        %v942 = vsub.f32 %v763, %v894
        %v943 = vsub.f32 %v769, %v896
        %v944 = vsub.f32 %v775, %v898
        %v945 = vsub.f32 %v781, %v900
        %v946 = vsub.f32 %v787, %v902
        %v947 = vsub.f32 %v793, %v904
        %v948 = vsub.f32 %v799, %v906
        %v949 = vsub.f32 %v805, %v908
        %v950 = vsub.f32 %v811, %v910
        %v951 = vsub.f32 %v817, %v912
        %v952 = vsub.f32 %v823, %v914
        %v953 = vsub.f32 %v829, %v916
        %v954 = vsub.f32 %v835, %v918
        %v955 = vsub.f32 %v841, %v920
        %v956 = vsub.f32 %v847, %v922
        %v957 = vsub.f32 %v853, %v924
        %v958 = vsub.f32 %v859, %v926
        %v959 = vmul.f32 %v927, 1.442695
        %v960 = vpow.pop %v959
        %v961 = vmul.f32 %v928, 1.442695
        %v962 = vpow.pop %v961
        %v963 = vmul.f32 %v929, 1.442695
        %v964 = vpow.pop %v963
        %v965 = vmul.f32 %v930, 1.442695
        %v966 = vpow.pop %v965
        %v967 = vmul.f32 %v931, 1.442695
        %v968 = vpow.pop %v967
        %v969 = vmul.f32 %v932, 1.442695
        %v970 = vpow.pop %v969
        %v971 = vmul.f32 %v933, 1.442695
        %v972 = vpow.pop %v971
        %v973 = vmul.f32 %v934, 1.442695
        %v974 = vpow.pop %v973
        %v975 = vmul.f32 %v935, 1.442695
        %v976 = vpow.pop %v975
        %v977 = vmul.f32 %v936, 1.442695
        %v978 = vpow.pop %v977
        %v979 = vmul.f32 %v937, 1.442695
        %v980 = vpow.pop %v979
        %v981 = vmul.f32 %v938, 1.442695
        %v982 = vpow.pop %v981
        %v983 = vmul.f32 %v939, 1.442695
        %v984 = vpow.pop %v983
        %v985 = vmul.f32 %v940, 1.442695
        %v986 = vpow.pop %v985
        %v987 = vmul.f32 %v941, 1.442695
        %v988 = vpow.pop %v987
        %v989 = vmul.f32 %v942, 1.442695
        %v990 = vpow.pop %v989
        %v991 = vmul.f32 %v943, 1.442695
        %v992 = vpow.pop %v991
        %v993 = vmul.f32 %v944, 1.442695
        %v994 = vpow.pop %v993
        %v995 = vmul.f32 %v945, 1.442695
        %v996 = vpow.pop %v995
        %v997 = vmul.f32 %v946, 1.442695
        %v998 = vpow.pop %v997
        %v999 = vmul.f32 %v947, 1.442695
        %v1000 = vpow.pop %v999
        %v1001 = vmul.f32 %v948, 1.442695
        %v1002 = vpow.pop %v1001
        %v1003 = vmul.f32 %v949, 1.442695
        %v1004 = vpow.pop %v1003
        %v1005 = vmul.f32 %v950, 1.442695
        %v1006 = vpow.pop %v1005
        %v1007 = vmul.f32 %v951, 1.442695
        %v1008 = vpow.pop %v1007
        %v1009 = vmul.f32 %v952, 1.442695
        %v1010 = vpow.pop %v1009
        %v1011 = vmul.f32 %v953, 1.442695
        %v1012 = vpow.pop %v1011
        %v1013 = vmul.f32 %v954, 1.442695
        %v1014 = vpow.pop %v1013
        %v1015 = vmul.f32 %v955, 1.442695
        %v1016 = vpow.pop %v1015
        %v1017 = vmul.f32 %v956, 1.442695
        %v1018 = vpow.pop %v1017
        %v1019 = vmul.f32 %v957, 1.442695
        %v1020 = vpow.pop %v1019
        %v1021 = vmul.f32 %v958, 1.442695
        %v1022 = vpow.pop %v1021
        %1023 = vadd.xlane.f32.xlu0 %v960
        %v1024 = vpop.xlane.xlu0 %1023
        %1025 = vadd.xlane.f32.xlu0 %v962
        %v1026 = vpop.xlane.xlu0 %1025
        %1027 = vadd.xlane.f32.xlu0 %v964
        %v1028 = vpop.xlane.xlu0 %1027
        %1029 = vadd.xlane.f32.xlu0 %v966
        %v1030 = vpop.xlane.xlu0 %1029
        %1031 = vadd.xlane.f32.xlu0 %v968
        %v1032 = vpop.xlane.xlu0 %1031
        %1033 = vadd.xlane.f32.xlu0 %v970
        %v1034 = vpop.xlane.xlu0 %1033
        %1035 = vadd.xlane.f32.xlu0 %v972
        %v1036 = vpop.xlane.xlu0 %1035
        %1037 = vadd.xlane.f32.xlu0 %v974
        %v1038 = vpop.xlane.xlu0 %1037
        %1039 = vadd.xlane.f32.xlu0 %v976
        %v1040 = vpop.xlane.xlu0 %1039
        %1041 = vadd.xlane.f32.xlu0 %v978
        %v1042 = vpop.xlane.xlu0 %1041
        %1043 = vadd.xlane.f32.xlu0 %v980
        %v1044 = vpop.xlane.xlu0 %1043
        %1045 = vadd.xlane.f32.xlu0 %v982
        %v1046 = vpop.xlane.xlu0 %1045
        %1047 = vadd.xlane.f32.xlu0 %v984
        %v1048 = vpop.xlane.xlu0 %1047
        %1049 = vadd.xlane.f32.xlu0 %v986
        %v1050 = vpop.xlane.xlu0 %1049
        %1051 = vadd.xlane.f32.xlu0 %v988
        %v1052 = vpop.xlane.xlu0 %1051
        %1053 = vadd.xlane.f32.xlu0 %v990
        %v1054 = vpop.xlane.xlu0 %1053
        %1055 = vadd.xlane.f32.xlu0 %v992
        %v1056 = vpop.xlane.xlu0 %1055
        %1057 = vadd.xlane.f32.xlu0 %v994
        %v1058 = vpop.xlane.xlu0 %1057
        %1059 = vadd.xlane.f32.xlu0 %v996
        %v1060 = vpop.xlane.xlu0 %1059
        %1061 = vadd.xlane.f32.xlu0 %v998
        %v1062 = vpop.xlane.xlu0 %1061
        %1063 = vadd.xlane.f32.xlu0 %v1000
        %v1064 = vpop.xlane.xlu0 %1063
        %1065 = vadd.xlane.f32.xlu0 %v1002
        %v1066 = vpop.xlane.xlu0 %1065
        %1067 = vadd.xlane.f32.xlu0 %v1004
        %v1068 = vpop.xlane.xlu0 %1067
        %1069 = vadd.xlane.f32.xlu0 %v1006
        %v1070 = vpop.xlane.xlu0 %1069
        %1071 = vadd.xlane.f32.xlu0 %v1008
        %v1072 = vpop.xlane.xlu0 %1071
        %1073 = vadd.xlane.f32.xlu0 %v1010
        %v1074 = vpop.xlane.xlu0 %1073
        %1075 = vadd.xlane.f32.xlu0 %v1012
        %v1076 = vpop.xlane.xlu0 %1075
        %1077 = vadd.xlane.f32.xlu0 %v1014
        %v1078 = vpop.xlane.xlu0 %1077
        %1079 = vadd.xlane.f32.xlu0 %v1016
        %v1080 = vpop.xlane.xlu0 %1079
        %1081 = vadd.xlane.f32.xlu0 %v1018
        %v1082 = vpop.xlane.xlu0 %1081
        %1083 = vadd.xlane.f32.xlu0 %v1020
        %v1084 = vpop.xlane.xlu0 %1083
        %1085 = vadd.xlane.f32.xlu0 %v1022
        %v1086 = vpop.xlane.xlu0 %1085
        %v1087 = vrcp.pop %v1024
        %v1088 = vmul.f32 %v960, %v1087
        %v1089 = vrcp.pop %v1026
        %v1090 = vmul.f32 %v962, %v1089
        %v1091 = vrcp.pop %v1028
        %v1092 = vmul.f32 %v964, %v1091
        %v1093 = vrcp.pop %v1030
        %v1094 = vmul.f32 %v966, %v1093
        %v1095 = vrcp.pop %v1032
        %v1096 = vmul.f32 %v968, %v1095
        %v1097 = vrcp.pop %v1034
        %v1098 = vmul.f32 %v970, %v1097
        %v1099 = vrcp.pop %v1036
        %v1100 = vmul.f32 %v972, %v1099
        %v1101 = vrcp.pop %v1038
        %v1102 = vmul.f32 %v974, %v1101
        %v1103 = vrcp.pop %v1040
        %v1104 = vmul.f32 %v976, %v1103
        %v1105 = vrcp.pop %v1042
        %v1106 = vmul.f32 %v978, %v1105
        %v1107 = vrcp.pop %v1044
        %v1108 = vmul.f32 %v980, %v1107
        %v1109 = vrcp.pop %v1046
        %v1110 = vmul.f32 %v982, %v1109
        %v1111 = vrcp.pop %v1048
        %v1112 = vmul.f32 %v984, %v1111
        %v1113 = vrcp.pop %v1050
        %v1114 = vmul.f32 %v986, %v1113
        %v1115 = vrcp.pop %v1052
        %v1116 = vmul.f32 %v988, %v1115
        %v1117 = vrcp.pop %v1054
        %v1118 = vmul.f32 %v990, %v1117
        %v1119 = vrcp.pop %v1056
        %v1120 = vmul.f32 %v992, %v1119
        %v1121 = vrcp.pop %v1058
        %v1122 = vmul.f32 %v994, %v1121
        %v1123 = vrcp.pop %v1060
        %v1124 = vmul.f32 %v996, %v1123
        %v1125 = vrcp.pop %v1062
        %v1126 = vmul.f32 %v998, %v1125
        %v1127 = vrcp.pop %v1064
        %v1128 = vmul.f32 %v1000, %v1127
        %v1129 = vrcp.pop %v1066
        %v1130 = vmul.f32 %v1002, %v1129
        %v1131 = vrcp.pop %v1068
        %v1132 = vmul.f32 %v1004, %v1131
        %v1133 = vrcp.pop %v1070
        %v1134 = vmul.f32 %v1006, %v1133
        %v1135 = vrcp.pop %v1072
        %v1136 = vmul.f32 %v1008, %v1135
        %v1137 = vrcp.pop %v1074
        %v1138 = vmul.f32 %v1010, %v1137
        %v1139 = vrcp.pop %v1076
        %v1140 = vmul.f32 %v1012, %v1139
        %v1141 = vrcp.pop %v1078
        %v1142 = vmul.f32 %v1014, %v1141
        %v1143 = vrcp.pop %v1080
        %v1144 = vmul.f32 %v1016, %v1143
        %v1145 = vrcp.pop %v1082
        %v1146 = vmul.f32 %v1018, %v1145
        %v1147 = vrcp.pop %v1084
        %v1148 = vmul.f32 %v1020, %v1147
        %v1149 = vrcp.pop %v1086
        %v1150 = vmul.f32 %v1022, %v1149
        %v1151 = vmul.f32 %v1088, %v675
        %v1152 = vmul.f32 %v1090, %v681
        %v1153 = vmul.f32 %v1092, %v687
        %v1154 = vmul.f32 %v1094, %v693
        %v1155 = vmul.f32 %v1096, %v699
        %v1156 = vmul.f32 %v1098, %v705
        %v1157 = vmul.f32 %v1100, %v711
        %v1158 = vmul.f32 %v1102, %v717
        %v1159 = vmul.f32 %v1104, %v723
        %v1160 = vmul.f32 %v1106, %v729
        %v1161 = vmul.f32 %v1108, %v735
        %v1162 = vmul.f32 %v1110, %v741
        %v1163 = vmul.f32 %v1112, %v747
        %v1164 = vmul.f32 %v1114, %v753
        %v1165 = vmul.f32 %v1116, %v759
        %v1166 = vmul.f32 %v1118, %v765
        %v1167 = vmul.f32 %v1120, %v771
        %v1168 = vmul.f32 %v1122, %v777
        %v1169 = vmul.f32 %v1124, %v783
        %v1170 = vmul.f32 %v1126, %v789
        %v1171 = vmul.f32 %v1128, %v795
        %v1172 = vmul.f32 %v1130, %v801
        %v1173 = vmul.f32 %v1132, %v807
        %v1174 = vmul.f32 %v1134, %v813
        %v1175 = vmul.f32 %v1136, %v819
        %v1176 = vmul.f32 %v1138, %v825
        %v1177 = vmul.f32 %v1140, %v831
        %v1178 = vmul.f32 %v1142, %v837
        %v1179 = vmul.f32 %v1144, %v843
        %v1180 = vmul.f32 %v1146, %v849
        %v1181 = vmul.f32 %v1148, %v855
        %v1182 = vmul.f32 %v1150, %v861
        %v1183 = vadd.f32 %v457, %v1151
        %v1184 = vadd.f32 %v458, %v1152
        %v1185 = vadd.f32 %v459, %v1153
        %v1186 = vadd.f32 %v460, %v1154
        %v1187 = vadd.f32 %v461, %v1155
        %v1188 = vadd.f32 %v462, %v1156
        %v1189 = vadd.f32 %v463, %v1157
        %v1190 = vadd.f32 %v464, %v1158
        %v1191 = vadd.f32 %v465, %v1159
        %v1192 = vadd.f32 %v466, %v1160
        %v1193 = vadd.f32 %v467, %v1161
        %v1194 = vadd.f32 %v468, %v1162
        %v1195 = vadd.f32 %v469, %v1163
        %v1196 = vadd.f32 %v470, %v1164
        %v1197 = vadd.f32 %v471, %v1165
        %v1198 = vadd.f32 %v472, %v1166
        %v1199 = vadd.f32 %v473, %v1167
        %v1200 = vadd.f32 %v474, %v1168
        %v1201 = vadd.f32 %v475, %v1169
        %v1202 = vadd.f32 %v476, %v1170
        %v1203 = vadd.f32 %v477, %v1171
        %v1204 = vadd.f32 %v478, %v1172
        %v1205 = vadd.f32 %v479, %v1173
        %v1206 = vadd.f32 %v480, %v1174
        %v1207 = vadd.f32 %v481, %v1175
        %v1208 = vadd.f32 %v482, %v1176
        %v1209 = vadd.f32 %v483, %v1177
        %v1210 = vadd.f32 %v484, %v1178
        %v1211 = vadd.f32 %v485, %v1179
        %v1212 = vadd.f32 %v486, %v1180
        %v1213 = vadd.f32 %v487, %v1181
        %v1214 = vadd.f32 %v488, %v1182
        %v1215 = vpack.c.bf16 %v1184, %v1183
        %v1216 = vpack.c.bf16 %v1186, %v1185
        %v1217 = vpack.c.bf16 %v1188, %v1187
        %v1218 = vpack.c.bf16 %v1190, %v1189
        %v1219 = vpack.c.bf16 %v1192, %v1191
        %v1220 = vpack.c.bf16 %v1194, %v1193
        %v1221 = vpack.c.bf16 %v1196, %v1195
        %v1222 = vpack.c.bf16 %v1198, %v1197
        %v1223 = vpack.c.bf16 %v1200, %v1199
        %v1224 = vpack.c.bf16 %v1202, %v1201
        %v1225 = vpack.c.bf16 %v1204, %v1203
        %v1226 = vpack.c.bf16 %v1206, %v1205
        %v1227 = vpack.c.bf16 %v1208, %v1207
        %v1228 = vpack.c.bf16 %v1210, %v1209
        %v1229 = vpack.c.bf16 %v1212, %v1211
        %v1230 = vpack.c.bf16 %v1214, %v1213
        %v1231 = vld [vmem:[%s4] sm:$0xf]
        %v1232 = vld [vmem:[%s4 + $0x4] sm:$0xf]
        %v1233 = vld [vmem:[%s4 + $0x8] sm:$0xf]
        %v1234 = vld [vmem:[%s4 + $0xc] sm:$0xf]
        %v1235 = vld [vmem:[%s4 + $0x10] sm:$0xf]
        %v1236 = vld [vmem:[%s4 + $0x14] sm:$0xf]
        %v1237 = vld [vmem:[%s4 + $0x18] sm:$0xf]
        %v1238 = vld [vmem:[%s4 + $0x1c] sm:$0xf]
        %v1239 = vld [vmem:[%s4 + $0x20] sm:$0xf]
        %v1240 = vld [vmem:[%s4 + $0x24] sm:$0xf]
        %v1241 = vld [vmem:[%s4 + $0x28] sm:$0xf]
        %v1242 = vld [vmem:[%s4 + $0x2c] sm:$0xf]
        %v1243 = vld [vmem:[%s4 + $0x30] sm:$0xf]
        %v1244 = vld [vmem:[%s4 + $0x34] sm:$0xf]
        %v1245 = vld [vmem:[%s4 + $0x38] sm:$0xf]
        %v1246 = vld [vmem:[%s4 + $0x3c] sm:$0xf]
        %v1247 = vld [vmem:[%s5] sm:$0x1]
        %v1249 = vlaneseq
        %v1250 = vshrl.u32 %v1249, 7
        %v1251 = vsub.s32 0, %v1250
        %v1252 = vrot.slane %v1247, %v1251
        %v1270 = vunpack.c.l.b16 %v1231
        %v1271 = vunpack.c.l.b16 %v1232
        %v1272 = vunpack.c.l.b16 %v1233
        %v1273 = vunpack.c.l.b16 %v1234
        %v1274 = vunpack.c.l.b16 %v1235
        %v1275 = vunpack.c.l.b16 %v1236
        %v1276 = vunpack.c.l.b16 %v1237
        %v1277 = vunpack.c.l.b16 %v1238
        %v1278 = vunpack.c.l.b16 %v1239
        %v1279 = vunpack.c.l.b16 %v1240
        %v1280 = vunpack.c.l.b16 %v1241
        %v1281 = vunpack.c.l.b16 %v1242
        %v1282 = vunpack.c.l.b16 %v1243
        %v1283 = vunpack.c.l.b16 %v1244
        %v1284 = vunpack.c.l.b16 %v1245
        %v1285 = vunpack.c.l.b16 %v1246
        %v1286 = vpack.c.b16 %v1271, %v1270
        %v1287 = vpack.c.b16 %v1273, %v1272
        %v1288 = vpack.c.b16 %v1275, %v1274
        %v1289 = vpack.c.b16 %v1277, %v1276
        %v1290 = vpack.c.b16 %v1279, %v1278
        %v1291 = vpack.c.b16 %v1281, %v1280
        %v1292 = vpack.c.b16 %v1283, %v1282
        %v1293 = vpack.c.b16 %v1285, %v1284
        %1302 = vmatprep.subr.bf16.mxu0 0
        %1303 = vmatpush1.bf16.msra.mxu0 %v1293
        %1304 = vmatprep.subr.bf16.mxu0 0
        %1305 = vmatpush1.bf16.msra.mxu0 %v1292
        %1306 = vmatprep.subr.bf16.mxu0 0
        %1307 = vmatpush1.bf16.msra.mxu0 %v1291
        %1308 = vmatprep.subr.bf16.mxu0 0
        %1309 = vmatpush1.bf16.msra.mxu0 %v1290
        %1310 = vmatprep.subr.bf16.mxu0 0
        %1311 = vmatpush1.bf16.msra.mxu0 %v1289
        %1312 = vmatprep.subr.bf16.mxu0 0
        %1313 = vmatpush1.bf16.msra.mxu0 %v1288
        %1314 = vmatprep.subr.bf16.mxu0 0
        %1315 = vmatpush1.bf16.msra.mxu0 %v1287
        %1316 = vmatprep.subr.bf16.mxu0 0
        %1317 = vmatpush1.bf16.msra.mxu0 %v1286
        %1318 = vmatprep.subr.bf16.mxu0 0
        %1319 = vmatpush2.bf16.msra.mxu0 0
        %1320 = vmatprep.subr.bf16.mxu0 0
        %1321 = vmatpush2.bf16.msra.mxu0 0
        %1322 = vmatprep.subr.bf16.mxu0 0
        %1323 = vmatpush2.bf16.msra.mxu0 0
        %1324 = vmatprep.subr.bf16.mxu0 0
        %1325 = vmatpush2.bf16.msra.mxu0 0
        %1326 = vmatprep.subr.bf16.mxu0 0
        %1327 = vmatpush2.bf16.msra.mxu0 0
        %1328 = vmatprep.subr.bf16.mxu0 0
        %1329 = vmatpush2.bf16.msra.mxu0 0
        %1330 = vmatprep.subr.bf16.mxu0 0
        %1331 = vmatpush2.bf16.msra.mxu0 0
        %1332 = vmatprep.subr.bf16.mxu0 0
        %1333 = vmatpush2.bf16.msra.mxu0 0
        %1334 = vmatprep.mubr.bf16.mxu0 0
        %1335 = vmatmul.mubr.bf16.gmra.mxu0 %v1215
        %v1336 = vpop.f32.mrf.mxu0
        %v1337 = vadd.f32 %v1252, %v1336
        %v1338 = vpop.f32.mrf.mxu0
        %v1339 = vpop.f32.mrf.mxu0
        %v1340 = vadd.f32 %v1252, %v1339
        %v1341 = vpop.f32.mrf.mxu0
        %1342 = vmatprep.mubr.bf16.mxu0 0
        %1343 = vmatmul.mubr.bf16.gmra.mxu0 %v1216
        %v1344 = vpop.f32.mrf.mxu0
        %v1345 = vadd.f32 %v1252, %v1344
        %v1346 = vpop.f32.mrf.mxu0
        %v1347 = vpop.f32.mrf.mxu0
        %v1348 = vadd.f32 %v1252, %v1347
        %v1349 = vpop.f32.mrf.mxu0
        %1350 = vmatprep.mubr.bf16.mxu0 0
        %1351 = vmatmul.mubr.bf16.gmra.mxu0 %v1217
        %v1352 = vpop.f32.mrf.mxu0
        %v1353 = vadd.f32 %v1252, %v1352
        %v1354 = vpop.f32.mrf.mxu0
        %v1355 = vpop.f32.mrf.mxu0
        %v1356 = vadd.f32 %v1252, %v1355
        %v1357 = vpop.f32.mrf.mxu0
        %1358 = vmatprep.mubr.bf16.mxu0 0
        %1359 = vmatmul.mubr.bf16.gmra.mxu0 %v1218
        %v1360 = vpop.f32.mrf.mxu0
        %v1361 = vadd.f32 %v1252, %v1360
        %v1362 = vpop.f32.mrf.mxu0
        %v1363 = vpop.f32.mrf.mxu0
        %v1364 = vadd.f32 %v1252, %v1363
        %v1365 = vpop.f32.mrf.mxu0
        %1366 = vmatprep.mubr.bf16.mxu0 0
        %1367 = vmatmul.mubr.bf16.gmra.mxu0 %v1219
        %v1368 = vpop.f32.mrf.mxu0
        %v1369 = vadd.f32 %v1252, %v1368
        %v1370 = vpop.f32.mrf.mxu0
        %v1371 = vpop.f32.mrf.mxu0
        %v1372 = vadd.f32 %v1252, %v1371
        %v1373 = vpop.f32.mrf.mxu0
        %1374 = vmatprep.mubr.bf16.mxu0 0
        %1375 = vmatmul.mubr.bf16.gmra.mxu0 %v1220
        %v1376 = vpop.f32.mrf.mxu0
        %v1377 = vadd.f32 %v1252, %v1376
        %v1378 = vpop.f32.mrf.mxu0
        %v1379 = vpop.f32.mrf.mxu0
        %v1380 = vadd.f32 %v1252, %v1379
        %v1381 = vpop.f32.mrf.mxu0
        %1382 = vmatprep.mubr.bf16.mxu0 0
        %1383 = vmatmul.mubr.bf16.gmra.mxu0 %v1221
        %v1384 = vpop.f32.mrf.mxu0
        %v1385 = vadd.f32 %v1252, %v1384
        %v1386 = vpop.f32.mrf.mxu0
        %v1387 = vpop.f32.mrf.mxu0
        %v1388 = vadd.f32 %v1252, %v1387
        %v1389 = vpop.f32.mrf.mxu0
        %1390 = vmatprep.mubr.bf16.mxu0 0
        %1391 = vmatmul.mubr.bf16.gmra.mxu0 %v1222
        %v1392 = vpop.f32.mrf.mxu0
        %v1393 = vadd.f32 %v1252, %v1392
        %v1394 = vpop.f32.mrf.mxu0
        %v1395 = vpop.f32.mrf.mxu0
        %v1396 = vadd.f32 %v1252, %v1395
        %v1397 = vpop.f32.mrf.mxu0
        %1398 = vmatprep.mubr.bf16.mxu0 0
        %1399 = vmatmul.mubr.bf16.gmra.mxu0 %v1223
        %v1400 = vpop.f32.mrf.mxu0
        %v1401 = vadd.f32 %v1252, %v1400
        %v1402 = vpop.f32.mrf.mxu0
        %v1403 = vpop.f32.mrf.mxu0
        %v1404 = vadd.f32 %v1252, %v1403
        %v1405 = vpop.f32.mrf.mxu0
        %1406 = vmatprep.mubr.bf16.mxu0 0
        %1407 = vmatmul.mubr.bf16.gmra.mxu0 %v1224
        %v1408 = vpop.f32.mrf.mxu0
        %v1409 = vadd.f32 %v1252, %v1408
        %v1410 = vpop.f32.mrf.mxu0
        %v1411 = vpop.f32.mrf.mxu0
        %v1412 = vadd.f32 %v1252, %v1411
        %v1413 = vpop.f32.mrf.mxu0
        %1414 = vmatprep.mubr.bf16.mxu0 0
        %1415 = vmatmul.mubr.bf16.gmra.mxu0 %v1225
        %v1416 = vpop.f32.mrf.mxu0
        %v1417 = vadd.f32 %v1252, %v1416
        %v1418 = vpop.f32.mrf.mxu0
        %v1419 = vpop.f32.mrf.mxu0
        %v1420 = vadd.f32 %v1252, %v1419
        %v1421 = vpop.f32.mrf.mxu0
        %1422 = vmatprep.mubr.bf16.mxu0 0
        %1423 = vmatmul.mubr.bf16.gmra.mxu0 %v1226
        %v1424 = vpop.f32.mrf.mxu0
        %v1425 = vadd.f32 %v1252, %v1424
        %v1426 = vpop.f32.mrf.mxu0
        %v1427 = vpop.f32.mrf.mxu0
        %v1428 = vadd.f32 %v1252, %v1427
        %v1429 = vpop.f32.mrf.mxu0
        %1430 = vmatprep.mubr.bf16.mxu0 0
        %1431 = vmatmul.mubr.bf16.gmra.mxu0 %v1227
        %v1432 = vpop.f32.mrf.mxu0
        %v1433 = vadd.f32 %v1252, %v1432
        %v1434 = vpop.f32.mrf.mxu0
        %v1435 = vpop.f32.mrf.mxu0
        %v1436 = vadd.f32 %v1252, %v1435
        %v1437 = vpop.f32.mrf.mxu0
        %1438 = vmatprep.mubr.bf16.mxu0 0
        %1439 = vmatmul.mubr.bf16.gmra.mxu0 %v1228
        %v1440 = vpop.f32.mrf.mxu0
        %v1441 = vadd.f32 %v1252, %v1440
        %v1442 = vpop.f32.mrf.mxu0
        %v1443 = vpop.f32.mrf.mxu0
        %v1444 = vadd.f32 %v1252, %v1443
        %v1445 = vpop.f32.mrf.mxu0
        %1446 = vmatprep.mubr.bf16.mxu0 0
        %1447 = vmatmul.mubr.bf16.gmra.mxu0 %v1229
        %v1448 = vpop.f32.mrf.mxu0
        %v1449 = vadd.f32 %v1252, %v1448
        %v1450 = vpop.f32.mrf.mxu0
        %v1451 = vpop.f32.mrf.mxu0
        %v1452 = vadd.f32 %v1252, %v1451
        %v1453 = vpop.f32.mrf.mxu0
        %1454 = vmatprep.mubr.bf16.mxu0 0
        %1455 = vmatmul.mubr.bf16.gmra.mxu0 %v1230
        %v1456 = vpop.f32.mrf.mxu0
        %v1457 = vadd.f32 %v1252, %v1456
        %v1458 = vpop.f32.mrf.mxu0
        %v1459 = vpop.f32.mrf.mxu0
        %v1460 = vadd.f32 %v1252, %v1459
        %v1461 = vpop.f32.mrf.mxu0
        %1462 = vdwg.mxu0
        %v1463 = vmax.f32 %v1337, 0.0
        %v1464 = vmax.f32 %v1340, 0.0
        %v1465 = vmax.f32 %v1345, 0.0
        %v1466 = vmax.f32 %v1348, 0.0
        %v1467 = vmax.f32 %v1353, 0.0
        %v1468 = vmax.f32 %v1356, 0.0
        %v1469 = vmax.f32 %v1361, 0.0
        %v1470 = vmax.f32 %v1364, 0.0
        %v1471 = vmax.f32 %v1369, 0.0
        %v1472 = vmax.f32 %v1372, 0.0
        %v1473 = vmax.f32 %v1377, 0.0
        %v1474 = vmax.f32 %v1380, 0.0
        %v1475 = vmax.f32 %v1385, 0.0
        %v1476 = vmax.f32 %v1388, 0.0
        %v1477 = vmax.f32 %v1393, 0.0
        %v1478 = vmax.f32 %v1396, 0.0
        %v1479 = vmax.f32 %v1401, 0.0
        %v1480 = vmax.f32 %v1404, 0.0
        %v1481 = vmax.f32 %v1409, 0.0
        %v1482 = vmax.f32 %v1412, 0.0
        %v1483 = vmax.f32 %v1417, 0.0
        %v1484 = vmax.f32 %v1420, 0.0
        %v1485 = vmax.f32 %v1425, 0.0
        %v1486 = vmax.f32 %v1428, 0.0
        %v1487 = vmax.f32 %v1433, 0.0
        %v1488 = vmax.f32 %v1436, 0.0
        %v1489 = vmax.f32 %v1441, 0.0
        %v1490 = vmax.f32 %v1444, 0.0
        %v1491 = vmax.f32 %v1449, 0.0
        %v1492 = vmax.f32 %v1452, 0.0
        %v1493 = vmax.f32 %v1457, 0.0
        %v1494 = vmax.f32 %v1460, 0.0
        %v1495 = vpack.c.bf16 %v1464, %v1463
        %v1496 = vpack.c.bf16 %v1466, %v1465
        %v1497 = vpack.c.bf16 %v1468, %v1467
        %v1498 = vpack.c.bf16 %v1470, %v1469
        %v1499 = vpack.c.bf16 %v1472, %v1471
        %v1500 = vpack.c.bf16 %v1474, %v1473
        %v1501 = vpack.c.bf16 %v1476, %v1475
        %v1502 = vpack.c.bf16 %v1478, %v1477
        %v1503 = vpack.c.bf16 %v1480, %v1479
        %v1504 = vpack.c.bf16 %v1482, %v1481
        %v1505 = vpack.c.bf16 %v1484, %v1483
        %v1506 = vpack.c.bf16 %v1486, %v1485
        %v1507 = vpack.c.bf16 %v1488, %v1487
        %v1508 = vpack.c.bf16 %v1490, %v1489
        %v1509 = vpack.c.bf16 %v1492, %v1491
        %v1510 = vpack.c.bf16 %v1494, %v1493
        %v1511 = vld [vmem:[%s6] sm:$0xf]
        %v1512 = vld [vmem:[%s6 + $0x4] sm:$0xf]
        %v1513 = vld [vmem:[%s6 + $0x8] sm:$0xf]
        %v1514 = vld [vmem:[%s6 + $0xc] sm:$0xf]
        %v1515 = vld [vmem:[%s6 + $0x10] sm:$0xf]
        %v1516 = vld [vmem:[%s6 + $0x14] sm:$0xf]
        %v1517 = vld [vmem:[%s6 + $0x18] sm:$0xf]
        %v1518 = vld [vmem:[%s6 + $0x1c] sm:$0xf]
        %v1519 = vld [vmem:[%s6 + $0x20] sm:$0xf]
        %v1520 = vld [vmem:[%s6 + $0x24] sm:$0xf]
        %v1521 = vld [vmem:[%s6 + $0x28] sm:$0xf]
        %v1522 = vld [vmem:[%s6 + $0x2c] sm:$0xf]
        %v1523 = vld [vmem:[%s6 + $0x30] sm:$0xf]
        %v1524 = vld [vmem:[%s6 + $0x34] sm:$0xf]
        %v1525 = vld [vmem:[%s6 + $0x38] sm:$0xf]
        %v1526 = vld [vmem:[%s6 + $0x3c] sm:$0xf]
        %v1527 = vld [vmem:[%s7] sm:$0x1]
        %v1529 = vlaneseq
        %v1530 = vshrl.u32 %v1529, 7
        %v1531 = vsub.s32 0, %v1530
        %v1532 = vrot.slane %v1527, %v1531
        %v1550 = vunpack.c.l.b16 %v1511
        %v1551 = vunpack.c.l.b16 %v1512
        %v1552 = vunpack.c.l.b16 %v1513
        %v1553 = vunpack.c.l.b16 %v1514
        %v1554 = vunpack.c.l.b16 %v1515
        %v1555 = vunpack.c.l.b16 %v1516
        %v1556 = vunpack.c.l.b16 %v1517
        %v1557 = vunpack.c.l.b16 %v1518
        %v1558 = vunpack.c.l.b16 %v1519
        %v1559 = vunpack.c.l.b16 %v1520
        %v1560 = vunpack.c.l.b16 %v1521
        %v1561 = vunpack.c.l.b16 %v1522
        %v1562 = vunpack.c.l.b16 %v1523
        %v1563 = vunpack.c.l.b16 %v1524
        %v1564 = vunpack.c.l.b16 %v1525
        %v1565 = vunpack.c.l.b16 %v1526
        %v1566 = vpack.c.b16 %v1551, %v1550
        %v1567 = vpack.c.b16 %v1553, %v1552
        %v1568 = vpack.c.b16 %v1555, %v1554
        %v1569 = vpack.c.b16 %v1557, %v1556
        %v1570 = vpack.c.b16 %v1559, %v1558
        %v1571 = vpack.c.b16 %v1561, %v1560
        %v1572 = vpack.c.b16 %v1563, %v1562
        %v1573 = vpack.c.b16 %v1565, %v1564
        %1582 = vmatprep.subr.bf16.mxu0 0
        %1583 = vmatpush1.bf16.msra.mxu0 %v1573
        %1584 = vmatprep.subr.bf16.mxu0 0
        %1585 = vmatpush1.bf16.msra.mxu0 %v1572
        %1586 = vmatprep.subr.bf16.mxu0 0
        %1587 = vmatpush1.bf16.msra.mxu0 %v1571
        %1588 = vmatprep.subr.bf16.mxu0 0
        %1589 = vmatpush1.bf16.msra.mxu0 %v1570
        %1590 = vmatprep.subr.bf16.mxu0 0
        %1591 = vmatpush1.bf16.msra.mxu0 %v1569
        %1592 = vmatprep.subr.bf16.mxu0 0
        %1593 = vmatpush1.bf16.msra.mxu0 %v1568
        %1594 = vmatprep.subr.bf16.mxu0 0
        %1595 = vmatpush1.bf16.msra.mxu0 %v1567
        %1596 = vmatprep.subr.bf16.mxu0 0
        %1597 = vmatpush1.bf16.msra.mxu0 %v1566
        %1598 = vmatprep.subr.bf16.mxu0 0
        %1599 = vmatpush2.bf16.msra.mxu0 0
        %1600 = vmatprep.subr.bf16.mxu0 0
        %1601 = vmatpush2.bf16.msra.mxu0 0
        %1602 = vmatprep.subr.bf16.mxu0 0
        %1603 = vmatpush2.bf16.msra.mxu0 0
        %1604 = vmatprep.subr.bf16.mxu0 0
        %1605 = vmatpush2.bf16.msra.mxu0 0
        %1606 = vmatprep.subr.bf16.mxu0 0
        %1607 = vmatpush2.bf16.msra.mxu0 0
        %1608 = vmatprep.subr.bf16.mxu0 0
        %1609 = vmatpush2.bf16.msra.mxu0 0
        %1610 = vmatprep.subr.bf16.mxu0 0
        %1611 = vmatpush2.bf16.msra.mxu0 0
        %1612 = vmatprep.subr.bf16.mxu0 0
        %1613 = vmatpush2.bf16.msra.mxu0 0
        %1614 = vmatprep.mubr.bf16.mxu0 0
        %1615 = vmatmul.mubr.bf16.gmra.mxu0 %v1495
        %v1616 = vpop.f32.mrf.mxu0
        %v1617 = vadd.f32 %v1532, %v1616
        %v1618 = vpop.f32.mrf.mxu0
        %v1619 = vpop.f32.mrf.mxu0
        %v1620 = vadd.f32 %v1532, %v1619
        %v1621 = vpop.f32.mrf.mxu0
        %1622 = vmatprep.mubr.bf16.mxu0 0
        %1623 = vmatmul.mubr.bf16.gmra.mxu0 %v1496
        %v1624 = vpop.f32.mrf.mxu0
        %v1625 = vadd.f32 %v1532, %v1624
        %v1626 = vpop.f32.mrf.mxu0
        %v1627 = vpop.f32.mrf.mxu0
        %v1628 = vadd.f32 %v1532, %v1627
        %v1629 = vpop.f32.mrf.mxu0
        %1630 = vmatprep.mubr.bf16.mxu0 0
        %1631 = vmatmul.mubr.bf16.gmra.mxu0 %v1497
        %v1632 = vpop.f32.mrf.mxu0
        %v1633 = vadd.f32 %v1532, %v1632
        %v1634 = vpop.f32.mrf.mxu0
        %v1635 = vpop.f32.mrf.mxu0
        %v1636 = vadd.f32 %v1532, %v1635
        %v1637 = vpop.f32.mrf.mxu0
        %1638 = vmatprep.mubr.bf16.mxu0 0
        %1639 = vmatmul.mubr.bf16.gmra.mxu0 %v1498
        %v1640 = vpop.f32.mrf.mxu0
        %v1641 = vadd.f32 %v1532, %v1640
        %v1642 = vpop.f32.mrf.mxu0
        %v1643 = vpop.f32.mrf.mxu0
        %v1644 = vadd.f32 %v1532, %v1643
        %v1645 = vpop.f32.mrf.mxu0
        %1646 = vmatprep.mubr.bf16.mxu0 0
        %1647 = vmatmul.mubr.bf16.gmra.mxu0 %v1499
        %v1648 = vpop.f32.mrf.mxu0
        %v1649 = vadd.f32 %v1532, %v1648
        %v1650 = vpop.f32.mrf.mxu0
        %v1651 = vpop.f32.mrf.mxu0
        %v1652 = vadd.f32 %v1532, %v1651
        %v1653 = vpop.f32.mrf.mxu0
        %1654 = vmatprep.mubr.bf16.mxu0 0
        %1655 = vmatmul.mubr.bf16.gmra.mxu0 %v1500
        %v1656 = vpop.f32.mrf.mxu0
        %v1657 = vadd.f32 %v1532, %v1656
        %v1658 = vpop.f32.mrf.mxu0
        %v1659 = vpop.f32.mrf.mxu0
        %v1660 = vadd.f32 %v1532, %v1659
        %v1661 = vpop.f32.mrf.mxu0
        %1662 = vmatprep.mubr.bf16.mxu0 0
        %1663 = vmatmul.mubr.bf16.gmra.mxu0 %v1501
        %v1664 = vpop.f32.mrf.mxu0
        %v1665 = vadd.f32 %v1532, %v1664
        %v1666 = vpop.f32.mrf.mxu0
        %v1667 = vpop.f32.mrf.mxu0
        %v1668 = vadd.f32 %v1532, %v1667
        %v1669 = vpop.f32.mrf.mxu0
        %1670 = vmatprep.mubr.bf16.mxu0 0
        %1671 = vmatmul.mubr.bf16.gmra.mxu0 %v1502
        %v1672 = vpop.f32.mrf.mxu0
        %v1673 = vadd.f32 %v1532, %v1672
        %v1674 = vpop.f32.mrf.mxu0
        %v1675 = vpop.f32.mrf.mxu0
        %v1676 = vadd.f32 %v1532, %v1675
        %v1677 = vpop.f32.mrf.mxu0
        %1678 = vmatprep.mubr.bf16.mxu0 0
        %1679 = vmatmul.mubr.bf16.gmra.mxu0 %v1503
        %v1680 = vpop.f32.mrf.mxu0
        %v1681 = vadd.f32 %v1532, %v1680
        %v1682 = vpop.f32.mrf.mxu0
        %v1683 = vpop.f32.mrf.mxu0
        %v1684 = vadd.f32 %v1532, %v1683
        %v1685 = vpop.f32.mrf.mxu0
        %1686 = vmatprep.mubr.bf16.mxu0 0
        %1687 = vmatmul.mubr.bf16.gmra.mxu0 %v1504
        %v1688 = vpop.f32.mrf.mxu0
        %v1689 = vadd.f32 %v1532, %v1688
        %v1690 = vpop.f32.mrf.mxu0
        %v1691 = vpop.f32.mrf.mxu0
        %v1692 = vadd.f32 %v1532, %v1691
        %v1693 = vpop.f32.mrf.mxu0
        %1694 = vmatprep.mubr.bf16.mxu0 0
        %1695 = vmatmul.mubr.bf16.gmra.mxu0 %v1505
        %v1696 = vpop.f32.mrf.mxu0
        %v1697 = vadd.f32 %v1532, %v1696
        %v1698 = vpop.f32.mrf.mxu0
        %v1699 = vpop.f32.mrf.mxu0
        %v1700 = vadd.f32 %v1532, %v1699
        %v1701 = vpop.f32.mrf.mxu0
        %1702 = vmatprep.mubr.bf16.mxu0 0
        %1703 = vmatmul.mubr.bf16.gmra.mxu0 %v1506
        %v1704 = vpop.f32.mrf.mxu0
        %v1705 = vadd.f32 %v1532, %v1704
        %v1706 = vpop.f32.mrf.mxu0
        %v1707 = vpop.f32.mrf.mxu0
        %v1708 = vadd.f32 %v1532, %v1707
        %v1709 = vpop.f32.mrf.mxu0
        %1710 = vmatprep.mubr.bf16.mxu0 0
        %1711 = vmatmul.mubr.bf16.gmra.mxu0 %v1507
        %v1712 = vpop.f32.mrf.mxu0
        %v1713 = vadd.f32 %v1532, %v1712
        %v1714 = vpop.f32.mrf.mxu0
        %v1715 = vpop.f32.mrf.mxu0
        %v1716 = vadd.f32 %v1532, %v1715
        %v1717 = vpop.f32.mrf.mxu0
        %1718 = vmatprep.mubr.bf16.mxu0 0
        %1719 = vmatmul.mubr.bf16.gmra.mxu0 %v1508
        %v1720 = vpop.f32.mrf.mxu0
        %v1721 = vadd.f32 %v1532, %v1720
        %v1722 = vpop.f32.mrf.mxu0
        %v1723 = vpop.f32.mrf.mxu0
        %v1724 = vadd.f32 %v1532, %v1723
        %v1725 = vpop.f32.mrf.mxu0
        %1726 = vmatprep.mubr.bf16.mxu0 0
        %1727 = vmatmul.mubr.bf16.gmra.mxu0 %v1509
        %v1728 = vpop.f32.mrf.mxu0
        %v1729 = vadd.f32 %v1532, %v1728
        %v1730 = vpop.f32.mrf.mxu0
        %v1731 = vpop.f32.mrf.mxu0
        %v1732 = vadd.f32 %v1532, %v1731
        %v1733 = vpop.f32.mrf.mxu0
        %1734 = vmatprep.mubr.bf16.mxu0 0
        %1735 = vmatmul.mubr.bf16.gmra.mxu0 %v1510
        %v1736 = vpop.f32.mrf.mxu0
        %v1737 = vadd.f32 %v1532, %v1736
        %v1738 = vpop.f32.mrf.mxu0
        %v1739 = vpop.f32.mrf.mxu0
        %v1740 = vadd.f32 %v1532, %v1739
        %v1741 = vpop.f32.mrf.mxu0
        %1742 = vdwg.mxu0
        %v1743 = vmax.f32 %v1617, 0.0
        %v1744 = vmax.f32 %v1620, 0.0
        %v1745 = vmax.f32 %v1625, 0.0
        %v1746 = vmax.f32 %v1628, 0.0
        %v1747 = vmax.f32 %v1633, 0.0
        %v1748 = vmax.f32 %v1636, 0.0
        %v1749 = vmax.f32 %v1641, 0.0
        %v1750 = vmax.f32 %v1644, 0.0
        %v1751 = vmax.f32 %v1649, 0.0
        %v1752 = vmax.f32 %v1652, 0.0
        %v1753 = vmax.f32 %v1657, 0.0
        %v1754 = vmax.f32 %v1660, 0.0
        %v1755 = vmax.f32 %v1665, 0.0
        %v1756 = vmax.f32 %v1668, 0.0
        %v1757 = vmax.f32 %v1673, 0.0
        %v1758 = vmax.f32 %v1676, 0.0
        %v1759 = vmax.f32 %v1681, 0.0
        %v1760 = vmax.f32 %v1684, 0.0
        %v1761 = vmax.f32 %v1689, 0.0
        %v1762 = vmax.f32 %v1692, 0.0
        %v1763 = vmax.f32 %v1697, 0.0
        %v1764 = vmax.f32 %v1700, 0.0
        %v1765 = vmax.f32 %v1705, 0.0
        %v1766 = vmax.f32 %v1708, 0.0
        %v1767 = vmax.f32 %v1713, 0.0
        %v1768 = vmax.f32 %v1716, 0.0
        %v1769 = vmax.f32 %v1721, 0.0
        %v1770 = vmax.f32 %v1724, 0.0
        %v1771 = vmax.f32 %v1729, 0.0
        %v1772 = vmax.f32 %v1732, 0.0
        %v1773 = vmax.f32 %v1737, 0.0
        %v1774 = vmax.f32 %v1740, 0.0
        %v1775 = vpack.c.bf16 %v1744, %v1743
        %v1776 = vpack.c.bf16 %v1746, %v1745
        %v1777 = vpack.c.bf16 %v1748, %v1747
        %v1778 = vpack.c.bf16 %v1750, %v1749
        %v1779 = vpack.c.bf16 %v1752, %v1751
        %v1780 = vpack.c.bf16 %v1754, %v1753
        %v1781 = vpack.c.bf16 %v1756, %v1755
        %v1782 = vpack.c.bf16 %v1758, %v1757
        %v1783 = vpack.c.bf16 %v1760, %v1759
        %v1784 = vpack.c.bf16 %v1762, %v1761
        %v1785 = vpack.c.bf16 %v1764, %v1763
        %v1786 = vpack.c.bf16 %v1766, %v1765
        %v1787 = vpack.c.bf16 %v1768, %v1767
        %v1788 = vpack.c.bf16 %v1770, %v1769
        %v1789 = vpack.c.bf16 %v1772, %v1771
        %v1790 = vpack.c.bf16 %v1774, %v1773
        %v1791 = vld [vmem:[%s8] sm:$0xf]
        %v1792 = vld [vmem:[%s8 + $0x4] sm:$0xf]
        %v1793 = vld [vmem:[%s8 + $0x8] sm:$0xf]
        %v1794 = vld [vmem:[%s8 + $0xc] sm:$0xf]
        %v1795 = vld [vmem:[%s8 + $0x10] sm:$0xf]
        %v1796 = vld [vmem:[%s8 + $0x14] sm:$0xf]
        %v1797 = vld [vmem:[%s8 + $0x18] sm:$0xf]
        %v1798 = vld [vmem:[%s8 + $0x1c] sm:$0xf]
        %v1799 = vld [vmem:[%s8 + $0x20] sm:$0xf]
        %v1800 = vld [vmem:[%s8 + $0x24] sm:$0xf]
        %v1801 = vld [vmem:[%s8 + $0x28] sm:$0xf]
        %v1802 = vld [vmem:[%s8 + $0x2c] sm:$0xf]
        %v1803 = vld [vmem:[%s8 + $0x30] sm:$0xf]
        %v1804 = vld [vmem:[%s8 + $0x34] sm:$0xf]
        %v1805 = vld [vmem:[%s8 + $0x38] sm:$0xf]
        %v1806 = vld [vmem:[%s8 + $0x3c] sm:$0xf]
        %v1807 = vld [vmem:[%s9] sm:$0x1]
        %v1809 = vlaneseq
        %v1810 = vshrl.u32 %v1809, 7
        %v1811 = vsub.s32 0, %v1810
        %v1812 = vrot.slane %v1807, %v1811
        %v1830 = vunpack.c.l.b16 %v1791
        %v1831 = vunpack.c.l.b16 %v1792
        %v1832 = vunpack.c.l.b16 %v1793
        %v1833 = vunpack.c.l.b16 %v1794
        %v1834 = vunpack.c.l.b16 %v1795
        %v1835 = vunpack.c.l.b16 %v1796
        %v1836 = vunpack.c.l.b16 %v1797
        %v1837 = vunpack.c.l.b16 %v1798
        %v1838 = vunpack.c.l.b16 %v1799
        %v1839 = vunpack.c.l.b16 %v1800
        %v1840 = vunpack.c.l.b16 %v1801
        %v1841 = vunpack.c.l.b16 %v1802
        %v1842 = vunpack.c.l.b16 %v1803
        %v1843 = vunpack.c.l.b16 %v1804
        %v1844 = vunpack.c.l.b16 %v1805
        %v1845 = vunpack.c.l.b16 %v1806
        %v1846 = vpack.c.b16 %v1831, %v1830
        %v1847 = vpack.c.b16 %v1833, %v1832
        %v1848 = vpack.c.b16 %v1835, %v1834
        %v1849 = vpack.c.b16 %v1837, %v1836
        %v1850 = vpack.c.b16 %v1839, %v1838
        %v1851 = vpack.c.b16 %v1841, %v1840
        %v1852 = vpack.c.b16 %v1843, %v1842
        %v1853 = vpack.c.b16 %v1845, %v1844
        %1862 = vmatprep.subr.bf16.mxu0 0
        %1863 = vmatpush1.bf16.msra.mxu0 %v1853
        %1864 = vmatprep.subr.bf16.mxu0 0
        %1865 = vmatpush1.bf16.msra.mxu0 %v1852
        %1866 = vmatprep.subr.bf16.mxu0 0
        %1867 = vmatpush1.bf16.msra.mxu0 %v1851
        %1868 = vmatprep.subr.bf16.mxu0 0
        %1869 = vmatpush1.bf16.msra.mxu0 %v1850
        %1870 = vmatprep.subr.bf16.mxu0 0
        %1871 = vmatpush1.bf16.msra.mxu0 %v1849
        %1872 = vmatprep.subr.bf16.mxu0 0
        %1873 = vmatpush1.bf16.msra.mxu0 %v1848
        %1874 = vmatprep.subr.bf16.mxu0 0
        %1875 = vmatpush1.bf16.msra.mxu0 %v1847
        %1876 = vmatprep.subr.bf16.mxu0 0
        %1877 = vmatpush1.bf16.msra.mxu0 %v1846
        %1878 = vmatprep.subr.bf16.mxu0 0
        %1879 = vmatpush2.bf16.msra.mxu0 0
        %1880 = vmatprep.subr.bf16.mxu0 0
        %1881 = vmatpush2.bf16.msra.mxu0 0
        %1882 = vmatprep.subr.bf16.mxu0 0
        %1883 = vmatpush2.bf16.msra.mxu0 0
        %1884 = vmatprep.subr.bf16.mxu0 0
        %1885 = vmatpush2.bf16.msra.mxu0 0
        %1886 = vmatprep.subr.bf16.mxu0 0
        %1887 = vmatpush2.bf16.msra.mxu0 0
        %1888 = vmatprep.subr.bf16.mxu0 0
        %1889 = vmatpush2.bf16.msra.mxu0 0
        %1890 = vmatprep.subr.bf16.mxu0 0
        %1891 = vmatpush2.bf16.msra.mxu0 0
        %1892 = vmatprep.subr.bf16.mxu0 0
        %1893 = vmatpush2.bf16.msra.mxu0 0
        %1894 = vmatprep.mubr.bf16.mxu0 0
        %1895 = vmatmul.mubr.bf16.gmra.mxu0 %v1775
        %v1896 = vpop.f32.mrf.mxu0
        %v1897 = vadd.f32 %v1812, %v1896
        %v1898 = vpop.f32.mrf.mxu0
        %v1899 = vpop.f32.mrf.mxu0
        %v1900 = vadd.f32 %v1812, %v1899
        %v1901 = vpop.f32.mrf.mxu0
        %1902 = vmatprep.mubr.bf16.mxu0 0
        %1903 = vmatmul.mubr.bf16.gmra.mxu0 %v1776
        %v1904 = vpop.f32.mrf.mxu0
        %v1905 = vadd.f32 %v1812, %v1904
        %v1906 = vpop.f32.mrf.mxu0
        %v1907 = vpop.f32.mrf.mxu0
        %v1908 = vadd.f32 %v1812, %v1907
        %v1909 = vpop.f32.mrf.mxu0
        %1910 = vmatprep.mubr.bf16.mxu0 0
        %1911 = vmatmul.mubr.bf16.gmra.mxu0 %v1777
        %v1912 = vpop.f32.mrf.mxu0
        %v1913 = vadd.f32 %v1812, %v1912
        %v1914 = vpop.f32.mrf.mxu0
        %v1915 = vpop.f32.mrf.mxu0
        %v1916 = vadd.f32 %v1812, %v1915
        %v1917 = vpop.f32.mrf.mxu0
        %1918 = vmatprep.mubr.bf16.mxu0 0
        %1919 = vmatmul.mubr.bf16.gmra.mxu0 %v1778
        %v1920 = vpop.f32.mrf.mxu0
        %v1921 = vadd.f32 %v1812, %v1920
        %v1922 = vpop.f32.mrf.mxu0
        %v1923 = vpop.f32.mrf.mxu0
        %v1924 = vadd.f32 %v1812, %v1923
        %v1925 = vpop.f32.mrf.mxu0
        %1926 = vmatprep.mubr.bf16.mxu0 0
        %1927 = vmatmul.mubr.bf16.gmra.mxu0 %v1779
        %v1928 = vpop.f32.mrf.mxu0
        %v1929 = vadd.f32 %v1812, %v1928
        %v1930 = vpop.f32.mrf.mxu0
        %v1931 = vpop.f32.mrf.mxu0
        %v1932 = vadd.f32 %v1812, %v1931
        %v1933 = vpop.f32.mrf.mxu0
        %1934 = vmatprep.mubr.bf16.mxu0 0
        %1935 = vmatmul.mubr.bf16.gmra.mxu0 %v1780
        %v1936 = vpop.f32.mrf.mxu0
        %v1937 = vadd.f32 %v1812, %v1936
        %v1938 = vpop.f32.mrf.mxu0
        %v1939 = vpop.f32.mrf.mxu0
        %v1940 = vadd.f32 %v1812, %v1939
        %v1941 = vpop.f32.mrf.mxu0
        %1942 = vmatprep.mubr.bf16.mxu0 0
        %1943 = vmatmul.mubr.bf16.gmra.mxu0 %v1781
        %v1944 = vpop.f32.mrf.mxu0
        %v1945 = vadd.f32 %v1812, %v1944
        %v1946 = vpop.f32.mrf.mxu0
        %v1947 = vpop.f32.mrf.mxu0
        %v1948 = vadd.f32 %v1812, %v1947
        %v1949 = vpop.f32.mrf.mxu0
        %1950 = vmatprep.mubr.bf16.mxu0 0
        %1951 = vmatmul.mubr.bf16.gmra.mxu0 %v1782
        %v1952 = vpop.f32.mrf.mxu0
        %v1953 = vadd.f32 %v1812, %v1952
        %v1954 = vpop.f32.mrf.mxu0
        %v1955 = vpop.f32.mrf.mxu0
        %v1956 = vadd.f32 %v1812, %v1955
        %v1957 = vpop.f32.mrf.mxu0
        %1958 = vmatprep.mubr.bf16.mxu0 0
        %1959 = vmatmul.mubr.bf16.gmra.mxu0 %v1783
        %v1960 = vpop.f32.mrf.mxu0
        %v1961 = vadd.f32 %v1812, %v1960
        %v1962 = vpop.f32.mrf.mxu0
        %v1963 = vpop.f32.mrf.mxu0
        %v1964 = vadd.f32 %v1812, %v1963
        %v1965 = vpop.f32.mrf.mxu0
        %1966 = vmatprep.mubr.bf16.mxu0 0
        %1967 = vmatmul.mubr.bf16.gmra.mxu0 %v1784
        %v1968 = vpop.f32.mrf.mxu0
        %v1969 = vadd.f32 %v1812, %v1968
        %v1970 = vpop.f32.mrf.mxu0
        %v1971 = vpop.f32.mrf.mxu0
        %v1972 = vadd.f32 %v1812, %v1971
        %v1973 = vpop.f32.mrf.mxu0
        %1974 = vmatprep.mubr.bf16.mxu0 0
        %1975 = vmatmul.mubr.bf16.gmra.mxu0 %v1785
        %v1976 = vpop.f32.mrf.mxu0
        %v1977 = vadd.f32 %v1812, %v1976
        %v1978 = vpop.f32.mrf.mxu0
        %v1979 = vpop.f32.mrf.mxu0
        %v1980 = vadd.f32 %v1812, %v1979
        %v1981 = vpop.f32.mrf.mxu0
        %1982 = vmatprep.mubr.bf16.mxu0 0
        %1983 = vmatmul.mubr.bf16.gmra.mxu0 %v1786
        %v1984 = vpop.f32.mrf.mxu0
        %v1985 = vadd.f32 %v1812, %v1984
        %v1986 = vpop.f32.mrf.mxu0
        %v1987 = vpop.f32.mrf.mxu0
        %v1988 = vadd.f32 %v1812, %v1987
        %v1989 = vpop.f32.mrf.mxu0
        %1990 = vmatprep.mubr.bf16.mxu0 0
        %1991 = vmatmul.mubr.bf16.gmra.mxu0 %v1787
        %v1992 = vpop.f32.mrf.mxu0
        %v1993 = vadd.f32 %v1812, %v1992
        %v1994 = vpop.f32.mrf.mxu0
        %v1995 = vpop.f32.mrf.mxu0
        %v1996 = vadd.f32 %v1812, %v1995
        %v1997 = vpop.f32.mrf.mxu0
        %1998 = vmatprep.mubr.bf16.mxu0 0
        %1999 = vmatmul.mubr.bf16.gmra.mxu0 %v1788
        %v2000 = vpop.f32.mrf.mxu0
        %v2001 = vadd.f32 %v1812, %v2000
        %v2002 = vpop.f32.mrf.mxu0
        %v2003 = vpop.f32.mrf.mxu0
        %v2004 = vadd.f32 %v1812, %v2003
        %v2005 = vpop.f32.mrf.mxu0
        %2006 = vmatprep.mubr.bf16.mxu0 0
        %2007 = vmatmul.mubr.bf16.gmra.mxu0 %v1789
        %v2008 = vpop.f32.mrf.mxu0
        %v2009 = vadd.f32 %v1812, %v2008
        %v2010 = vpop.f32.mrf.mxu0
        %v2011 = vpop.f32.mrf.mxu0
        %v2012 = vadd.f32 %v1812, %v2011
        %v2013 = vpop.f32.mrf.mxu0
        %2014 = vmatprep.mubr.bf16.mxu0 0
        %2015 = vmatmul.mubr.bf16.gmra.mxu0 %v1790
        %v2016 = vpop.f32.mrf.mxu0
        %v2017 = vadd.f32 %v1812, %v2016
        %v2018 = vpop.f32.mrf.mxu0
        %v2019 = vpop.f32.mrf.mxu0
        %v2020 = vadd.f32 %v1812, %v2019
        %v2021 = vpop.f32.mrf.mxu0
        %2022 = vdwg.mxu0
        %vm2023 = vcmask 80896
        %2024 = vst.msk [vmem:[%s421] sm:$0xff] %vm2023, %v1897
        %2025 = vst.msk [vmem:[%s421 + $0x8] sm:$0xff] %vm2023, %v1900
        %2026 = vst.msk [vmem:[%s421 + $0x10] sm:$0xff] %vm2023, %v1905
        %2027 = vst.msk [vmem:[%s421 + $0x18] sm:$0xff] %vm2023, %v1908
        %2028 = vst.msk [vmem:[%s421 + $0x20] sm:$0xff] %vm2023, %v1913
        %2029 = vst.msk [vmem:[%s421 + $0x28] sm:$0xff] %vm2023, %v1916
        %2030 = vst.msk [vmem:[%s421 + $0x30] sm:$0xff] %vm2023, %v1921
        %2031 = vst.msk [vmem:[%s421 + $0x38] sm:$0xff] %vm2023, %v1924
        %2032 = vst.msk [vmem:[%s421 + $0x40] sm:$0xff] %vm2023, %v1929
        %2033 = vst.msk [vmem:[%s421 + $0x48] sm:$0xff] %vm2023, %v1932
        %2034 = vst.msk [vmem:[%s421 + $0x50] sm:$0xff] %vm2023, %v1937
        %2035 = vst.msk [vmem:[%s421 + $0x58] sm:$0xff] %vm2023, %v1940
        %2036 = vst.msk [vmem:[%s421 + $0x60] sm:$0xff] %vm2023, %v1945
        %2037 = vst.msk [vmem:[%s421 + $0x68] sm:$0xff] %vm2023, %v1948
        %2038 = vst.msk [vmem:[%s421 + $0x70] sm:$0xff] %vm2023, %v1953
        %2039 = vst.msk [vmem:[%s421 + $0x78] sm:$0xff] %vm2023, %v1956
        %2040 = vst.msk [vmem:[%s421 + $0x80] sm:$0xff] %vm2023, %v1961
        %2041 = vst.msk [vmem:[%s421 + $0x88] sm:$0xff] %vm2023, %v1964
        %2042 = vst.msk [vmem:[%s421 + $0x90] sm:$0xff] %vm2023, %v1969
        %2043 = vst.msk [vmem:[%s421 + $0x98] sm:$0xff] %vm2023, %v1972
        %2044 = vst.msk [vmem:[%s421 + $0xa0] sm:$0xff] %vm2023, %v1977
        %2045 = vst.msk [vmem:[%s421 + $0xa8] sm:$0xff] %vm2023, %v1980
        %2046 = vst.msk [vmem:[%s421 + $0xb0] sm:$0xff] %vm2023, %v1985
        %2047 = vst.msk [vmem:[%s421 + $0xb8] sm:$0xff] %vm2023, %v1988
        %2048 = vst.msk [vmem:[%s421 + $0xc0] sm:$0xff] %vm2023, %v1993
        %2049 = vst.msk [vmem:[%s421 + $0xc8] sm:$0xff] %vm2023, %v1996
        %2050 = vst.msk [vmem:[%s421 + $0xd0] sm:$0xff] %vm2023, %v2001
        %2051 = vst.msk [vmem:[%s421 + $0xd8] sm:$0xff] %vm2023, %v2004
        %2052 = vst.msk [vmem:[%s421 + $0xe0] sm:$0xff] %vm2023, %v2009
        %2053 = vst.msk [vmem:[%s421 + $0xe8] sm:$0xff] %vm2023, %v2012
        %2054 = vst.msk [vmem:[%s421 + $0xf0] sm:$0xff] %vm2023, %v2017
        %2055 = vst.msk [vmem:[%s421 + $0xf8] sm:$0xff] %vm2023, %v2020
        %2056 = vst [vmem:[%s404] sm:$0xff] %v1183
        %2057 = vst [vmem:[%s404 + $0x8] sm:$0xff] %v1184
        %2058 = vst [vmem:[%s404 + $0x10] sm:$0xff] %v1185
        %2059 = vst [vmem:[%s404 + $0x18] sm:$0xff] %v1186
        %2060 = vst [vmem:[%s404 + $0x20] sm:$0xff] %v1187
        %2061 = vst [vmem:[%s404 + $0x28] sm:$0xff] %v1188
        %2062 = vst [vmem:[%s404 + $0x30] sm:$0xff] %v1189
        %2063 = vst [vmem:[%s404 + $0x38] sm:$0xff] %v1190
        %2064 = vst [vmem:[%s404 + $0x40] sm:$0xff] %v1191
        %2065 = vst [vmem:[%s404 + $0x48] sm:$0xff] %v1192
        %2066 = vst [vmem:[%s404 + $0x50] sm:$0xff] %v1193
        %2067 = vst [vmem:[%s404 + $0x58] sm:$0xff] %v1194
        %2068 = vst [vmem:[%s404 + $0x60] sm:$0xff] %v1195
        %2069 = vst [vmem:[%s404 + $0x68] sm:$0xff] %v1196
        %2070 = vst [vmem:[%s404 + $0x70] sm:$0xff] %v1197
        %2071 = vst [vmem:[%s404 + $0x78] sm:$0xff] %v1198
        %2072 = vst [vmem:[%s404 + $0x80] sm:$0xff] %v1199
        %2073 = vst [vmem:[%s404 + $0x88] sm:$0xff] %v1200
        %2074 = vst [vmem:[%s404 + $0x90] sm:$0xff] %v1201
        %2075 = vst [vmem:[%s404 + $0x98] sm:$0xff] %v1202
        %2076 = vst [vmem:[%s404 + $0xa0] sm:$0xff] %v1203
        %2077 = vst [vmem:[%s404 + $0xa8] sm:$0xff] %v1204
        %2078 = vst [vmem:[%s404 + $0xb0] sm:$0xff] %v1205
        %2079 = vst [vmem:[%s404 + $0xb8] sm:$0xff] %v1206
        %2080 = vst [vmem:[%s404 + $0xc0] sm:$0xff] %v1207
        %2081 = vst [vmem:[%s404 + $0xc8] sm:$0xff] %v1208
        %2082 = vst [vmem:[%s404 + $0xd0] sm:$0xff] %v1209
        %2083 = vst [vmem:[%s404 + $0xd8] sm:$0xff] %v1210
        %2084 = vst [vmem:[%s404 + $0xe0] sm:$0xff] %v1211
        %2085 = vst [vmem:[%s404 + $0xe8] sm:$0xff] %v1212
        %2086 = vst [vmem:[%s404 + $0xf0] sm:$0xff] %v1213
        %2087 = vst [vmem:[%s404 + $0xf8] sm:$0xff] %v1214
        %s2088 = smul.u32 32, %s26
        %p2089 = scmp.lt.s32.totalorder %s2088, 63
        %s2090 = scalar_select %p2089, %s2088, 63
        %s2091 = smul.addr %s2090, 8
        %s2092 = scalar_lea.vmem %s10, %s2091
        %s2093 = sand.u32 %s280, 1
        %s2094 = scalar_lea.sflag [#allocation3], %s2093
        %s2095 = sand.u32 %s280, 1
        %s2096 = smul.addr %s2095, 256
        %s2097 = scalar_lea.vmem [#allocation2], %s2096
        // Predicated region
        $region61: #{cognition_forward.1} parent=59 // pred_check
          %p2098 = pneg %p264
        $region62: #{cognition_forward.1} parent=59 // pred_check_branch
          %2100 = sbr.rel (%p2098) target = $region64
        $region63: #{cognition_forward.1} parent=59 // pred_region
          %s2101 = smul.u32 32, %s26
        $region64: #{cognition_forward.1} parent=59 // pred_fallthru
          _
        // Predicated region
        $region65: #{cognition_forward.1} parent=59 // pred_check
          %p2102 = pneg %p290
        $region66: #{cognition_forward.1} parent=59 // pred_check_branch
          %2104 = sbr.rel (%p2102) target = $region68
        $region67: #{cognition_forward.1} parent=59 // pred_region
          %s2105 = smul.u32 32, %s26
          %s2107 = ssub.s32 4096, 4096
          %2108 = vsyncadd %s2094, %s2107
          %s2109 = smul.addr %s2105, 128
          %s2110 = scalar_lea.hbm %s11, %s2109
          %s2111 = sshll.u32 %s2097, 4
          %s2112 = int_to_ptr.vmem [resolvable:$true] %s2111
          %2117 = dma.vmem_to_hbm [thread:$0]  %s2112, 4096, %s2110, %s2094, 128, 128, 8
        $region68: #{cognition_forward.1} parent=59 // pred_fallthru
          _
      $region60: #{cognition_forward.1} parent=5 // pred_fallthru
        _
      %p2118 = scmp.le.s32.totalorder 2, %s21
      // Predicated region
      $region69: #{cognition_forward.1} parent=5 // pred_check
        %p2119 = pneg %p2118
      $region70: #{cognition_forward.1} parent=5 // pred_check_branch
        %2121 = sbr.rel (%p2119) target = $region72
      $region71: #{cognition_forward.1} parent=5 // pred_region
        %s2122 = ssub.s32 %s21, 2
        // Predicated region
        $region73: #{cognition_forward.1} parent=71 // pred_check
          %p2123 = pneg %p270
        $region74: #{cognition_forward.1} parent=71 // pred_check_branch
          %2125 = sbr.rel (%p2123) target = $region76
        $region75: #{cognition_forward.1} parent=71 // pred_region
          %s2126 = smul.u32 32, %s27
          %p2127 = scmp.lt.s32.totalorder %s2126, 63
          %s2128 = scalar_select %p2127, %s2126, 63
          %s2129 = smul.addr %s2128, 8
          %s2130 = scalar_lea.vmem %s10, %s2129
        $region76: #{cognition_forward.1} parent=71 // pred_fallthru
          _
        // Predicated region
        $region77: #{cognition_forward.1} parent=71 // pred_check
          %p2131 = pneg %p296
        $region78: #{cognition_forward.1} parent=71 // pred_check_branch
          %2133 = sbr.rel (%p2131) target = $region80
        $region79: #{cognition_forward.1} parent=71 // pred_region
          %s2134 = sand.u32 %s281, 1
          %s2135 = scalar_lea.sflag [#allocation3], %s2134
          %s2136 = sand.u32 %s281, 1
          %s2137 = smul.addr %s2136, 256
          %s2138 = scalar_lea.vmem [#allocation2], %s2137
          %2139 = dma.done %s2135, 4096
        $region80: #{cognition_forward.1} parent=71 // pred_fallthru
          _
      $region72: #{cognition_forward.1} parent=5 // pred_fallthru
        _
    $region6: #{cognition_forward.1} parent=1 // loop_footer
      %s25 = sadd.s32 1, %s21
    $region7: #{cognition_forward.1} parent=1 // loop_footer_branch
      %20 = sbr.rel target = $region3
    $region8: #{cognition_forward.1} parent=1 // loop_exit
      _
    %2140 = vsyncpa [#allocation3], 1
    %s2141 = scalar_lea.sflag [#allocation3], 1
    %2142 = vsyncpa %s2141, 1

</llo_original>
